<compile_context>
chip_gen: v7x
topology: tpu7x:2x2x1
jax: 0.10.0
libtpu: 0.0.40
codegen_flags: <defaults>
</compile_context>

<pallas_src>
import functools
import math

import jax
import jax.numpy as jnp
from jax import lax
from jax.experimental import pallas as pl
from jax.experimental.pallas import tpu as pltpu


# ----------------------------- helpers --------------------------------------

def _layernorm(v, w, b, eps=1e-5):
    mu = jnp.mean(v, axis=-1, keepdims=True)
    var = jnp.mean((v - mu) ** 2, axis=-1, keepdims=True)
    return (v - mu) * lax.rsqrt(var + eps) * w + b


def _gelu_tanh(x):
    # GELU with tanh approximation (matches nn.GELU(approximate='tanh'))
    c = math.sqrt(2.0 / math.pi)
    return 0.5 * x * (1.0 + jnp.tanh(c * (x + 0.044715 * x * x * x)))


def _pick_block(n, target):
    """Largest divisor of n that is <= target and a multiple of 8 (else n)."""
    if n <= target:
        return n
    for b in range(target, 7, -8):
        if n % b == 0:
            return b
    return n


def _pick_chunk(n, target, mult=128):
    """Largest divisor of n that is <= target and a multiple of mult (else n)."""
    if n <= target:
        return n
    start = (target // mult) * mult
    for c in range(start, mult - 1, -mult):
        if n % c == 0:
            return c
    return n


def _chip_defaults():
    """Per-generation (vmem_limit_bytes, block_q, block_rows)."""
    try:
        kind = jax.devices()[0].device_kind.lower()
    except Exception:
        kind = ""
    mib = 1024 * 1024
    if "v7" in kind:                    # v7x: 64 MiB physical VMEM, 256-wide MXU
        return 52 * mib, 256, 512
    if "v6" in kind:                    # v6e: 128 MiB VMEM, 256-wide MXU
        return 100 * mib, 256, 1024
    if "v5" in kind or "v4" in kind:    # v5e/v5p/v4: 128 MiB VMEM, 128-wide MXU
        return 100 * mib, 128, 512
    # Unknown chip: conservative values that still fit v7x's 64 MiB physical VMEM.
    return 48 * mib, 128, 512


# ----------------------------- kernel 1: LN1 + QKV ---------------------------

def ln_qkv_kernel(x_ref, ln1w_ref, ln1b_ref, wqkv_ref, bqkv_ref,
                  q_ref, k_ref, v_ref):
    n_head, _, hd = q_ref.shape
    C = x_ref.shape[-1]

    x = x_ref[...].astype(jnp.float32)                               # (rt, C)
    h = _layernorm(x, ln1w_ref[0], ln1b_ref[0]).astype(wqkv_ref.dtype)
    qkv = jnp.dot(h, wqkv_ref[...],
                  preferred_element_type=jnp.float32) + bqkv_ref[0]  # (rt, 3C)
    qkv = qkv.astype(q_ref.dtype)

    # Head split on the VMEM tile (avoids an XLA-side HBM relayout pass).
    for hi in range(n_head):
        q_ref[hi] = qkv[:, hi * hd:(hi + 1) * hd]
        k_ref[hi] = qkv[:, C + hi * hd:C + (hi + 1) * hd]
        v_ref[hi] = qkv[:, 2 * C + hi * hd:2 * C + (hi + 1) * hd]


# ------------- kernel 2: flash attention (tiled K/V) + proj + MLP ------------

def attn_mlp_kernel(x_ref, q_ref, k_hbm, v_hbm,
                    wap_ref, bap_ref, ln2w_ref, ln2b_ref,
                    wfc_ref, bfc_ref, wmp_ref, bmp_ref,
                    o_ref,
                    kbuf, vbuf, sem, m_sc, l_sc, acc_sc,
                    *, hchunk):
    b = pl.program_id(0)
    qi = pl.program_id(1)
    n_head, bq, hd = q_ref.shape
    C = x_ref.shape[-1]
    cd = q_ref.dtype
    scale = 1.0 / math.sqrt(hd)

    # ---- manual double-buffered K/V tiles (K/V never fully VMEM-resident) ----
    def start_fetch(kb, slot):
        ks = pl.multiple_of(kb * bq, bq)
        pltpu.make_async_copy(k_hbm.at[b, :, pl.ds(ks, bq), :],
                              kbuf.at[slot], sem.at[0, slot]).start()
        pltpu.make_async_copy(v_hbm.at[b, :, pl.ds(ks, bq), :],
                              vbuf.at[slot], sem.at[1, slot]).start()

    def wait_fetch(slot):
        pltpu.make_async_copy(k_hbm.at[b, :, pl.ds(0, bq), :],
                              kbuf.at[slot], sem.at[0, slot]).wait()
        pltpu.make_async_copy(v_hbm.at[b, :, pl.ds(0, bq), :],
                              vbuf.at[slot], sem.at[1, slot]).wait()

    start_fetch(0, 0)

    # Scale q once, in f32, then feed the MXU in the compute dtype.
    q = (q_ref[...].astype(jnp.float32) * scale).astype(cd)     # (h, bq, hd)

    # Online-softmax state (f32).
    m_sc[...] = jnp.full(m_sc.shape, -1e30, m_sc.dtype)
    l_sc[...] = jnp.zeros(l_sc.shape, l_sc.dtype)
    acc_sc[...] = jnp.zeros(acc_sc.shape, acc_sc.dtype)

    def attend(slot, mask):
        kblk = kbuf[slot]                                        # (h, bq, hd)
        vblk = vbuf[slot]
        s = jnp.einsum('hqd,hkd->hqk', q, kblk,
                       preferred_element_type=jnp.float32)       # (h, bq, bq)
        if mask is not None:
            s = jnp.where(mask, s, -1e30)
        m_prev = m_sc[...]
        m_new = jnp.maximum(m_prev, jnp.max(s, axis=-1, keepdims=True))
        alpha = jnp.exp(m_prev - m_new)
        p = jnp.exp(s - m_new)                                   # f32 softmax math
        l_sc[...] = alpha * l_sc[...] + jnp.sum(p, axis=-1, keepdims=True)
        acc_sc[...] = alpha * acc_sc[...] + jnp.einsum(
            'hqk,hkd->hqd', p.astype(cd), vblk,
            preferred_element_type=jnp.float32)
        m_sc[...] = m_new

    # Off-diagonal KV blocks: fully below the diagonal -> no mask work at all.
    @pl.loop(0, qi)
    def _(kb):
        slot = kb & 1
        wait_fetch(slot)
        start_fetch(kb + 1, 1 - slot)        # prefetch next KV tile
        attend(slot, None)

    # Diagonal block: q_start == k_start, so the mask is a static row >= col.
    diag_mask = (lax.broadcasted_iota(jnp.int32, (1, bq, bq), 1)
                 >= lax.broadcasted_iota(jnp.int32, (1, bq, bq), 2))
    dslot = qi & 1
    wait_fetch(dslot)
    attend(dslot, diag_mask)

    # Finalize softmax.  approx reciprocal (EUP) only on the bf16 path.
    if jnp.dtype(cd) == jnp.dtype(jnp.bfloat16):
        inv_l = pl.reciprocal(l_sc[...], approx=True)
    else:
        inv_l = 1.0 / l_sc[...]
    att = acc_sc[...] * inv_l                                    # (h, bq, hd) f32

    # Head merge + attention out-projection as per-head matmul accumulation:
    # sum_h att[h] @ Wproj[h]  ==  concat_h(att[h]) @ Wproj  (no lane stores).
    y = jnp.zeros((bq, C), jnp.float32)
    for hi in range(n_head):
        y = y + jnp.dot(att[hi].astype(cd), wap_ref[hi],
                        preferred_element_type=jnp.float32)
    y = y + bap_ref[0]

    x1 = x_ref[...].astype(jnp.float32) + y                      # residual 1

    h2 = _layernorm(x1, ln2w_ref[0], ln2b_ref[0]).astype(cd)

    # MLP tiled over the 4C hidden dim: GELU on each (bq, hchunk) slice and
    # accumulate the down-projection -- the full (bq, 4C) f32 never exists.
    H = wfc_ref.shape[-1]
    f = jnp.zeros((bq, C), jnp.float32)
    for lo in range(0, H, hchunk):
        g = jnp.dot(h2, wfc_ref[:, lo:lo + hchunk],
                    preferred_element_type=jnp.float32) + bfc_ref[0, lo:lo + hchunk]
        g = _gelu_tanh(g).astype(cd)
        f = f + jnp.dot(g, wmp_ref[lo:lo + hchunk, :],
                        preferred_element_type=jnp.float32)
    f = f + bmp_ref[0]

    o_ref[...] = (x1 + f).astype(o_ref.dtype)                    # residual 2


# ----------------------------- wrapper ---------------------------------------

def block_forward(x, params, n_head, *, compute_dtype=jnp.bfloat16,
                  block_q=None, block_rows=None, single_buffer_weights=True):
    B, T, C = x.shape
    hd = C // n_head
    (ln1w, ln1b, wqkv, bqkv, wap, bap, ln2w, ln2b, wfc, bfc, wmp, bmp) = params

    vmem_limit, bq_default, rows_default = _chip_defaults()
    if block_q is None:
        block_q = bq_default
    if block_rows is None:
        block_rows = rows_default

    cd = compute_dtype
    # Cast MXU-feeding weights once, in the wrapper (halves DMA + VMEM on bf16).
    wqkv_c = wqkv.astype(cd)
    wap_c = wap.reshape(n_head, hd, C).astype(cd)   # head-split out-projection
    wfc_c = wfc.astype(cd)
    wmp_c = wmp.astype(cd)

    def inv_spec(arr):
        """Grid-invariant operand: constant index_map, single-buffered."""
        nd = arr.ndim
        idx = lambda *args, _nd=nd: (0,) * _nd
        if single_buffer_weights:
            return pl.BlockSpec(arr.shape, idx, pipeline_mode=pl.Buffered(1))
        return pl.BlockSpec(arr.shape, idx)

    # ---- kernel 1: LN1 + QKV projection, head-split q/k/v outputs ----
    rt = _pick_block(T, block_rows)
    nt = T // rt

    q, k, v = pl.pallas_call(
        ln_qkv_kernel,
        out_shape=tuple(jax.ShapeDtypeStruct((B, n_head, T, hd), cd)
                        for _ in range(3)),
        grid_spec=pltpu.PrefetchScalarGridSpec(
            num_scalar_prefetch=0,
            grid=(B, nt),
            in_specs=[
                pl.BlockSpec((None, rt, C), lambda b, i: (b, i, 0)),
                inv_spec(ln1w), inv_spec(ln1b),
                inv_spec(wqkv_c), inv_spec(bqkv),
            ],
            out_specs=[
                pl.BlockSpec((None, n_head, rt, hd), lambda b, i: (b, 0, i, 0)),
                pl.BlockSpec((None, n_head, rt, hd), lambda b, i: (b, 0, i, 0)),
                pl.BlockSpec((None, n_head, rt, hd), lambda b, i: (b, 0, i, 0)),
            ],
        ),
        compiler_params=pltpu.CompilerParams(
            dimension_semantics=("parallel", "parallel"),
            vmem_limit_bytes=vmem_limit),
    )(x, ln1w, ln1b, wqkv_c, bqkv)

    # ---- kernel 2: flash attention + proj + residual + LN2 + MLP + residual
    bq = _pick_block(T, block_q)
    nq = T // bq
    hchunk = _pick_chunk(4 * C, 512)

    out = pl.pallas_call(
        functools.partial(attn_mlp_kernel, hchunk=hchunk),
        out_shape=jax.ShapeDtypeStruct((B, T, C), x.dtype),
        grid_spec=pltpu.PrefetchScalarGridSpec(
            num_scalar_prefetch=0,
            grid=(B, nq),
            in_specs=[
                pl.BlockSpec((None, bq, C), lambda b, i: (b, i, 0)),              # x
                pl.BlockSpec((None, n_head, bq, hd), lambda b, i: (b, 0, i, 0)),  # q
                pl.BlockSpec(memory_space=pl.ANY),                                # k (HBM)
                pl.BlockSpec(memory_space=pl.ANY),                                # v (HBM)
                inv_spec(wap_c), inv_spec(bap),
                inv_spec(ln2w), inv_spec(ln2b),
                inv_spec(wfc_c), inv_spec(bfc),
                inv_spec(wmp_c), inv_spec(bmp),
            ],
            out_specs=pl.BlockSpec((None, bq, C), lambda b, i: (b, i, 0)),
            scratch_shapes=[
                pltpu.VMEM((2, n_head, bq, hd), cd),          # K tile double-buffer
                pltpu.VMEM((2, n_head, bq, hd), cd),          # V tile double-buffer
                pltpu.SemaphoreType.DMA((2, 2)),              # [k/v, slot]
                pltpu.VMEM((n_head, bq, 1), jnp.float32),     # m (online max)
                pltpu.VMEM((n_head, bq, 1), jnp.float32),     # l (online sum)
                pltpu.VMEM((n_head, bq, hd), jnp.float32),    # attention acc
            ],
        ),
        compiler_params=pltpu.CompilerParams(
            dimension_semantics=("parallel", "parallel"),
            vmem_limit_bytes=vmem_limit),
    )(x, q, k, v, wap_c, bap, ln2w, ln2b, wfc_c, bfc, wmp_c, bmp)

    return out


# ----------------------------- pure-JAX reference ----------------------------

def reference_forward(x, params, n_head):
    (ln1w, ln1b, wqkv, bqkv, wap, bap, ln2w, ln2b, wfc, bfc, wmp, bmp) = params
    B, T, C = x.shape
    hd = C // n_head

    def ln(v, w, b):
        mu = jnp.mean(v, -1, keepdims=True)
        var = jnp.mean((v - mu) ** 2, -1, keepdims=True)
        return (v - mu) / jnp.sqrt(var + 1e-5) * w[0] + b[0]

    h = ln(x, ln1w, ln1b)
    qkv = h @ wqkv + bqkv[0]
    q, k, v = jnp.split(qkv, 3, axis=-1)
    q = q.reshape(B, T, n_head, hd).transpose(0, 2, 1, 3)
    k = k.reshape(B, T, n_head, hd).transpose(0, 2, 1, 3)
    v = v.reshape(B, T, n_head, hd).transpose(0, 2, 1, 3)
    s = jnp.einsum("bhqd,bhkd->bhqk", q, k) / math.sqrt(hd)
    mask = jnp.tril(jnp.ones((T, T), bool))
    s = jnp.where(mask[None, None], s, -jnp.inf)
    p = jax.nn.softmax(s, axis=-1)
    y = jnp.einsum("bhqk,bhkd->bhqd", p, v).transpose(0, 2, 1, 3).reshape(B, T, C)
    y = y @ wap + bap[0]
    x1 = x + y
    h2 = ln(x1, ln2w, ln2b)
    f = h2 @ wfc + bfc[0]
    c = math.sqrt(2.0 / math.pi)
    f = 0.5 * f * (1.0 + jnp.tanh(c * (f + 0.044715 * f ** 3)))
    f = f @ wmp + bmp[0]
    return x1 + f


# ----------------------------- demo / check ----------------------------------

if __name__ == "__main__":
    # Small config consistent with the module: n_embd=32, n_head=4, B=2, T=8
    B, T, C, n_head = 2, 8, 32, 4

    key = jax.random.PRNGKey(0)
    ks = jax.random.split(key, 16)
    scale = 0.02

    x = jax.random.normal(ks[0], (B, T, C), jnp.float32)

    # LayerNorm params (PyTorch default init: weight=1, bias=0)
    ln1w = jnp.ones((1, C), jnp.float32)
    ln1b = jnp.zeros((1, C), jnp.float32)
    ln2w = jnp.ones((1, C), jnp.float32)
    ln2b = jnp.zeros((1, C), jnp.float32)

    # Linear weights, stored (in, out) = W.T of PyTorch's (out, in)
    wqkv = scale * jax.random.normal(ks[1], (C, 3 * C), jnp.float32)
    bqkv = scale * jax.random.normal(ks[2], (1, 3 * C), jnp.float32)
    wap = scale * jax.random.normal(ks[3], (C, C), jnp.float32)
    bap = scale * jax.random.normal(ks[4], (1, C), jnp.float32)
    wfc = scale * jax.random.normal(ks[5], (C, 4 * C), jnp.float32)
    bfc = scale * jax.random.normal(ks[6], (1, 4 * C), jnp.float32)
    wmp = scale * jax.random.normal(ks[7], (4 * C, C), jnp.float32)
    bmp = scale * jax.random.normal(ks[8], (1, C), jnp.float32)

    params = (ln1w, ln1b, wqkv, bqkv, wap, bap, ln2w, ln2b, wfc, bfc, wmp, bmp)

    ref = reference_forward(x, params, n_head)

    def run(cd):
        try:
            return block_forward(x, params, n_head, compute_dtype=cd)
        except Exception:
            # Fallback: some JAX builds reject pipeline_mode=pl.Buffered(1);
            # retry with default (double-buffered) specs.
            return block_forward(x, params, n_head, compute_dtype=cd,
                                 single_buffer_weights=False)

    # f32 compute path (tight check, exact softmax divide).
    out_f32 = jax.block_until_ready(run(jnp.float32))
    assert out_f32.shape == (B, T, C)
    err32 = float(jnp.max(jnp.abs(out_f32 - ref)))
    assert jnp.allclose(out_f32, ref, atol=2e-3, rtol=2e-3), (
        f"f32 path mismatch, max|diff|={err32}")

    # bf16 MXU-operand path (recommended for v5e/v6e/v7x), looser tolerance.
    out_bf16 = jax.block_until_ready(run(jnp.bfloat16))
    assert out_bf16.shape == (B, T, C)
    err16 = float(jnp.max(jnp.abs(out_bf16 - ref)))
    assert jnp.allclose(out_bf16, ref, atol=3e-2, rtol=3e-2), (
        f"bf16 path mismatch, max|diff|={err16}")

    # TODO(synk): attn/resid dropout (p=0.05) is eval-mode identity here; no RNG drop masks.
    print("KERNEL_OK")
</pallas_src>

<mosaic_0001>
module attributes {stable_mosaic.version = 11 : i64} {
  func.func @ln_qkv_kernel(%arg0: i32, %arg1: i32, %arg2: memref<1x8x32xf32, #tpu.memory_space<vmem>>, %arg3: memref<1x32xf32, #tpu.memory_space<vmem>>, %arg4: memref<1x32xf32, #tpu.memory_space<vmem>>, %arg5: memref<32x96xf32, #tpu.memory_space<vmem>>, %arg6: memref<1x96xf32, #tpu.memory_space<vmem>>, %arg7: memref<1x4x8x8xf32, #tpu.memory_space<vmem>>, %arg8: memref<1x4x8x8xf32, #tpu.memory_space<vmem>>, %arg9: memref<1x4x8x8xf32, #tpu.memory_space<vmem>>) attributes {dimension_semantics = [#tpu.dimension_semantics<parallel>, #tpu.dimension_semantics<parallel>], iteration_bounds = array<i64: 2, 1>, scalar_prefetch = 0 : i64, scratch_operands = 0 : i64, tpu.core_type = #tpu.core_type<tc>, window_params = [{transform_indices = @transform_0, window_bounds = array<i64: 1, 8, 32>}, {pipeline_mode = #tpu.pipeline_mode<synchronous>, transform_indices = @transform_1, window_bounds = array<i64: 1, 32>}, {pipeline_mode = #tpu.pipeline_mode<synchronous>, transform_indices = @transform_2, window_bounds = array<i64: 1, 32>}, {pipeline_mode = #tpu.pipeline_mode<synchronous>, transform_indices = @transform_3, window_bounds = array<i64: 32, 96>}, {pipeline_mode = #tpu.pipeline_mode<synchronous>, transform_indices = @transform_4, window_bounds = array<i64: 1, 96>}, {transform_indices = @transform_5, window_bounds = array<i64: 1, 4, 8, 8>}, {transform_indices = @transform_6, window_bounds = array<i64: 1, 4, 8, 8>}, {transform_indices = @transform_7, window_bounds = array<i64: 1, 4, 8, 8>}]} {
    %c0 = arith.constant 0 : index
    %c0_0 = arith.constant 0 : index
    %c0_1 = arith.constant 0 : index
    %0 = vector.load %arg2[%c0, %c0_0, %c0_1] : memref<1x8x32xf32, #tpu.memory_space<vmem>>, vector<1x8x32xf32>
    %1 = vector.shape_cast %0 : vector<1x8x32xf32> to vector<8x32xf32>
    %c0_2 = arith.constant 0 : index
    %c0_3 = arith.constant 0 : index
    %2 = vector.load %arg3[%c0_2, %c0_3] : memref<1x32xf32, #tpu.memory_space<vmem>>, vector<1x32xf32>
    %3 = vector.shape_cast %2 : vector<1x32xf32> to vector<32xf32>
    %c0_4 = arith.constant 0 : index
    %c0_5 = arith.constant 0 : index
    %4 = vector.load %arg4[%c0_4, %c0_5] : memref<1x32xf32, #tpu.memory_space<vmem>>, vector<1x32xf32>
    %5 = vector.shape_cast %4 : vector<1x32xf32> to vector<32xf32>
    %cst = arith.constant dense<0.000000e+00> : vector<8xf32>
    %6 = vector.multi_reduction <add>, %1, %cst [1] : vector<8x32xf32> to vector<8xf32>
    %7 = vector.shape_cast %6 : vector<8xf32> to vector<8x1xf32>
    %cst_6 = arith.constant 3.200000e+01 : f32
    %8 = vector.broadcast %cst_6 : f32 to vector<8x1xf32>
    %9 = arith.divf %7, %8 : vector<8x1xf32>
    %10 = vector.broadcast %9 : vector<8x1xf32> to vector<8x32xf32>
    %11 = arith.subf %1, %10 : vector<8x32xf32>
    %12 = arith.mulf %11, %11 : vector<8x32xf32>
    %cst_7 = arith.constant dense<0.000000e+00> : vector<8xf32>
    %13 = vector.multi_reduction <add>, %12, %cst_7 [1] : vector<8x32xf32> to vector<8xf32>
    %14 = vector.shape_cast %13 : vector<8xf32> to vector<8x1xf32>
    %cst_8 = arith.constant 3.200000e+01 : f32
    %15 = vector.broadcast %cst_8 : f32 to vector<8x1xf32>
    %16 = arith.divf %14, %15 : vector<8x1xf32>
    %17 = vector.broadcast %9 : vector<8x1xf32> to vector<8x32xf32>
    %18 = arith.subf %1, %17 : vector<8x32xf32>
    %cst_9 = arith.constant 9.99999974E-6 : f32
    %19 = vector.broadcast %cst_9 : f32 to vector<8x1xf32>
    %20 = arith.addf %16, %19 : vector<8x1xf32>
    %21 = math.rsqrt %20 : vector<8x1xf32>
    %22 = vector.broadcast %21 : vector<8x1xf32> to vector<8x32xf32>
    %23 = arith.mulf %18, %22 : vector<8x32xf32>
    %24 = vector.shape_cast %3 : vector<32xf32> to vector<1x32xf32>
    %25 = vector.broadcast %24 : vector<1x32xf32> to vector<8x32xf32>
    %26 = arith.mulf %23, %25 : vector<8x32xf32>
    %27 = vector.shape_cast %5 : vector<32xf32> to vector<1x32xf32>
    %28 = vector.broadcast %27 : vector<1x32xf32> to vector<8x32xf32>
    %29 = arith.addf %26, %28 : vector<8x32xf32>
    %c0_10 = arith.constant 0 : index
    %c0_11 = arith.constant 0 : index
    %30 = vector.load %arg5[%c0_10, %c0_11] : memref<32x96xf32, #tpu.memory_space<vmem>>, vector<32x96xf32>
    %cst_12 = arith.constant dense<0.000000e+00> : vector<8x96xf32>
    %31 = tpu.matmul %29, %30, %cst_12 {dimension_numbers = #tpu.dot_dimension_numbers<[1], [0], [0], [1], [0, 0, 1, 1], [], []>} : vector<8x32xf32>, vector<32x96xf32>, vector<8x96xf32> -> vector<8x96xf32>
    %c0_13 = arith.constant 0 : index
    %c0_14 = arith.constant 0 : index
    %32 = vector.load %arg6[%c0_13, %c0_14] : memref<1x96xf32, #tpu.memory_space<vmem>>, vector<1x96xf32>
    %33 = vector.shape_cast %32 : vector<1x96xf32> to vector<96xf32>
    %34 = vector.shape_cast %33 : vector<96xf32> to vector<1x96xf32>
    %35 = vector.broadcast %34 : vector<1x96xf32> to vector<8x96xf32>
    %36 = arith.addf %31, %35 : vector<8x96xf32>
    %37 = vector.extract_strided_slice %36 {offsets = [0, 0], sizes = [8, 8], strides = [1, 1]} : vector<8x96xf32> to vector<8x8xf32>
    %c0_15 = arith.constant 0 : index
    %c0_16 = arith.constant 0 : index
    %c0_17 = arith.constant 0 : index
    %c0_18 = arith.constant 0 : index
    %38 = vector.load %arg7[%c0_15, %c0_16, %c0_17, %c0_18] : memref<1x4x8x8xf32, #tpu.memory_space<vmem>>, vector<1x1x8x8xf32>
    %39 = vector.shape_cast %38 : vector<1x1x8x8xf32> to vector<8x8xf32>
    %40 = vector.shape_cast %37 : vector<8x8xf32> to vector<1x1x8x8xf32>
    tpu.vector_store %arg7[%c0_15, %c0_16, %c0_17, %c0_18], %40 {strides = array<i32>} : memref<1x4x8x8xf32, #tpu.memory_space<vmem>>, vector<1x1x8x8xf32>,
    %41 = vector.extract_strided_slice %36 {offsets = [0, 32], sizes = [8, 8], strides = [1, 1]} : vector<8x96xf32> to vector<8x8xf32>
    %c0_19 = arith.constant 0 : index
    %c0_20 = arith.constant 0 : index
    %c0_21 = arith.constant 0 : index
    %c0_22 = arith.constant 0 : index
    %42 = vector.load %arg8[%c0_19, %c0_20, %c0_21, %c0_22] : memref<1x4x8x8xf32, #tpu.memory_space<vmem>>, vector<1x1x8x8xf32>
    %43 = vector.shape_cast %42 : vector<1x1x8x8xf32> to vector<8x8xf32>
    %44 = vector.shape_cast %41 : vector<8x8xf32> to vector<1x1x8x8xf32>
    tpu.vector_store %arg8[%c0_19, %c0_20, %c0_21, %c0_22], %44 {strides = array<i32>} : memref<1x4x8x8xf32, #tpu.memory_space<vmem>>, vector<1x1x8x8xf32>,
    %45 = vector.extract_strided_slice %36 {offsets = [0, 64], sizes = [8, 8], strides = [1, 1]} : vector<8x96xf32> to vector<8x8xf32>
    %c0_23 = arith.constant 0 : index
    %c0_24 = arith.constant 0 : index
    %c0_25 = arith.constant 0 : index
    %c0_26 = arith.constant 0 : index
    %46 = vector.load %arg9[%c0_23, %c0_24, %c0_25, %c0_26] : memref<1x4x8x8xf32, #tpu.memory_space<vmem>>, vector<1x1x8x8xf32>
    %47 = vector.shape_cast %46 : vector<1x1x8x8xf32> to vector<8x8xf32>
    %48 = vector.shape_cast %45 : vector<8x8xf32> to vector<1x1x8x8xf32>
    tpu.vector_store %arg9[%c0_23, %c0_24, %c0_25, %c0_26], %48 {strides = array<i32>} : memref<1x4x8x8xf32, #tpu.memory_space<vmem>>, vector<1x1x8x8xf32>,
    %49 = vector.extract_strided_slice %36 {offsets = [0, 8], sizes = [8, 8], strides = [1, 1]} : vector<8x96xf32> to vector<8x8xf32>
    %c0_27 = arith.constant 0 : index
    %c1 = arith.constant 1 : index
    %c0_28 = arith.constant 0 : index
    %c0_29 = arith.constant 0 : index
    %50 = vector.load %arg7[%c0_27, %c1, %c0_28, %c0_29] : memref<1x4x8x8xf32, #tpu.memory_space<vmem>>, vector<1x1x8x8xf32>
    %51 = vector.shape_cast %50 : vector<1x1x8x8xf32> to vector<8x8xf32>
    %52 = vector.shape_cast %49 : vector<8x8xf32> to vector<1x1x8x8xf32>
    tpu.vector_store %arg7[%c0_27, %c1, %c0_28, %c0_29], %52 {strides = array<i32>} : memref<1x4x8x8xf32, #tpu.memory_space<vmem>>, vector<1x1x8x8xf32>,
    %53 = vector.extract_strided_slice %36 {offsets = [0, 40], sizes = [8, 8], strides = [1, 1]} : vector<8x96xf32> to vector<8x8xf32>
    %c0_30 = arith.constant 0 : index
    %c1_31 = arith.constant 1 : index
    %c0_32 = arith.constant 0 : index
    %c0_33 = arith.constant 0 : index
    %54 = vector.load %arg8[%c0_30, %c1_31, %c0_32, %c0_33] : memref<1x4x8x8xf32, #tpu.memory_space<vmem>>, vector<1x1x8x8xf32>
    %55 = vector.shape_cast %54 : vector<1x1x8x8xf32> to vector<8x8xf32>
    %56 = vector.shape_cast %53 : vector<8x8xf32> to vector<1x1x8x8xf32>
    tpu.vector_store %arg8[%c0_30, %c1_31, %c0_32, %c0_33], %56 {strides = array<i32>} : memref<1x4x8x8xf32, #tpu.memory_space<vmem>>, vector<1x1x8x8xf32>,
    %57 = vector.extract_strided_slice %36 {offsets = [0, 72], sizes = [8, 8], strides = [1, 1]} : vector<8x96xf32> to vector<8x8xf32>
    %c0_34 = arith.constant 0 : index
    %c1_35 = arith.constant 1 : index
    %c0_36 = arith.constant 0 : index
    %c0_37 = arith.constant 0 : index
    %58 = vector.load %arg9[%c0_34, %c1_35, %c0_36, %c0_37] : memref<1x4x8x8xf32, #tpu.memory_space<vmem>>, vector<1x1x8x8xf32>
    %59 = vector.shape_cast %58 : vector<1x1x8x8xf32> to vector<8x8xf32>
    %60 = vector.shape_cast %57 : vector<8x8xf32> to vector<1x1x8x8xf32>
    tpu.vector_store %arg9[%c0_34, %c1_35, %c0_36, %c0_37], %60 {strides = array<i32>} : memref<1x4x8x8xf32, #tpu.memory_space<vmem>>, vector<1x1x8x8xf32>,
    %61 = vector.extract_strided_slice %36 {offsets = [0, 16], sizes = [8, 8], strides = [1, 1]} : vector<8x96xf32> to vector<8x8xf32>
    %c0_38 = arith.constant 0 : index
    %c2 = arith.constant 2 : index
    %c0_39 = arith.constant 0 : index
    %c0_40 = arith.constant 0 : index
    %62 = vector.load %arg7[%c0_38, %c2, %c0_39, %c0_40] : memref<1x4x8x8xf32, #tpu.memory_space<vmem>>, vector<1x1x8x8xf32>
    %63 = vector.shape_cast %62 : vector<1x1x8x8xf32> to vector<8x8xf32>
    %64 = vector.shape_cast %61 : vector<8x8xf32> to vector<1x1x8x8xf32>
    tpu.vector_store %arg7[%c0_38, %c2, %c0_39, %c0_40], %64 {strides = array<i32>} : memref<1x4x8x8xf32, #tpu.memory_space<vmem>>, vector<1x1x8x8xf32>,
    %65 = vector.extract_strided_slice %36 {offsets = [0, 48], sizes = [8, 8], strides = [1, 1]} : vector<8x96xf32> to vector<8x8xf32>
    %c0_41 = arith.constant 0 : index
    %c2_42 = arith.constant 2 : index
    %c0_43 = arith.constant 0 : index
    %c0_44 = arith.constant 0 : index
    %66 = vector.load %arg8[%c0_41, %c2_42, %c0_43, %c0_44] : memref<1x4x8x8xf32, #tpu.memory_space<vmem>>, vector<1x1x8x8xf32>
    %67 = vector.shape_cast %66 : vector<1x1x8x8xf32> to vector<8x8xf32>
    %68 = vector.shape_cast %65 : vector<8x8xf32> to vector<1x1x8x8xf32>
    tpu.vector_store %arg8[%c0_41, %c2_42, %c0_43, %c0_44], %68 {strides = array<i32>} : memref<1x4x8x8xf32, #tpu.memory_space<vmem>>, vector<1x1x8x8xf32>,
    %69 = vector.extract_strided_slice %36 {offsets = [0, 80], sizes = [8, 8], strides = [1, 1]} : vector<8x96xf32> to vector<8x8xf32>
    %c0_45 = arith.constant 0 : index
    %c2_46 = arith.constant 2 : index
    %c0_47 = arith.constant 0 : index
    %c0_48 = arith.constant 0 : index
    %70 = vector.load %arg9[%c0_45, %c2_46, %c0_47, %c0_48] : memref<1x4x8x8xf32, #tpu.memory_space<vmem>>, vector<1x1x8x8xf32>
    %71 = vector.shape_cast %70 : vector<1x1x8x8xf32> to vector<8x8xf32>
    %72 = vector.shape_cast %69 : vector<8x8xf32> to vector<1x1x8x8xf32>
    tpu.vector_store %arg9[%c0_45, %c2_46, %c0_47, %c0_48], %72 {strides = array<i32>} : memref<1x4x8x8xf32, #tpu.memory_space<vmem>>, vector<1x1x8x8xf32>,
    %73 = vector.extract_strided_slice %36 {offsets = [0, 24], sizes = [8, 8], strides = [1, 1]} : vector<8x96xf32> to vector<8x8xf32>
    %c0_49 = arith.constant 0 : index
    %c3 = arith.constant 3 : index
    %c0_50 = arith.constant 0 : index
    %c0_51 = arith.constant 0 : index
    %74 = vector.load %arg7[%c0_49, %c3, %c0_50, %c0_51] : memref<1x4x8x8xf32, #tpu.memory_space<vmem>>, vector<1x1x8x8xf32>
    %75 = vector.shape_cast %74 : vector<1x1x8x8xf32> to vector<8x8xf32>
    %76 = vector.shape_cast %73 : vector<8x8xf32> to vector<1x1x8x8xf32>
    tpu.vector_store %arg7[%c0_49, %c3, %c0_50, %c0_51], %76 {strides = array<i32>} : memref<1x4x8x8xf32, #tpu.memory_space<vmem>>, vector<1x1x8x8xf32>,
    %77 = vector.extract_strided_slice %36 {offsets = [0, 56], sizes = [8, 8], strides = [1, 1]} : vector<8x96xf32> to vector<8x8xf32>
    %c0_52 = arith.constant 0 : index
    %c3_53 = arith.constant 3 : index
    %c0_54 = arith.constant 0 : index
    %c0_55 = arith.constant 0 : index
    %78 = vector.load %arg8[%c0_52, %c3_53, %c0_54, %c0_55] : memref<1x4x8x8xf32, #tpu.memory_space<vmem>>, vector<1x1x8x8xf32>
    %79 = vector.shape_cast %78 : vector<1x1x8x8xf32> to vector<8x8xf32>
    %80 = vector.shape_cast %77 : vector<8x8xf32> to vector<1x1x8x8xf32>
    tpu.vector_store %arg8[%c0_52, %c3_53, %c0_54, %c0_55], %80 {strides = array<i32>} : memref<1x4x8x8xf32, #tpu.memory_space<vmem>>, vector<1x1x8x8xf32>,
    %81 = vector.extract_strided_slice %36 {offsets = [0, 88], sizes = [8, 8], strides = [1, 1]} : vector<8x96xf32> to vector<8x8xf32>
    %c0_56 = arith.constant 0 : index
    %c3_57 = arith.constant 3 : index
    %c0_58 = arith.constant 0 : index
    %c0_59 = arith.constant 0 : index
    %82 = vector.load %arg9[%c0_56, %c3_57, %c0_58, %c0_59] : memref<1x4x8x8xf32, #tpu.memory_space<vmem>>, vector<1x1x8x8xf32>
    %83 = vector.shape_cast %82 : vector<1x1x8x8xf32> to vector<8x8xf32>
    %84 = vector.shape_cast %81 : vector<8x8xf32> to vector<1x1x8x8xf32>
    tpu.vector_store %arg9[%c0_56, %c3_57, %c0_58, %c0_59], %84 {strides = array<i32>} : memref<1x4x8x8xf32, #tpu.memory_space<vmem>>, vector<1x1x8x8xf32>,
    return
  }
  func.func @transform_0(%arg0: i32, %arg1: i32) -> (i32, i32, i32) {
    %c0_i32 = arith.constant 0 : i32
    %c0_i32_0 = arith.constant 0 : i32
    return %arg0, %arg1, %c0_i32 : i32, i32, i32
  }
  func.func @transform_1(%arg0: i32, %arg1: i32) -> (i32, i32) {
    %c0_i32 = arith.constant 0 : i32
    %c0_i32_0 = arith.constant 0 : i32
    %c0_i32_1 = arith.constant 0 : i32
    return %c0_i32, %c0_i32_0 : i32, i32
  }
  func.func @transform_2(%arg0: i32, %arg1: i32) -> (i32, i32) {
    %c0_i32 = arith.constant 0 : i32
    %c0_i32_0 = arith.constant 0 : i32
    %c0_i32_1 = arith.constant 0 : i32
    return %c0_i32, %c0_i32_0 : i32, i32
  }
  func.func @transform_3(%arg0: i32, %arg1: i32) -> (i32, i32) {
    %c0_i32 = arith.constant 0 : i32
    %c0_i32_0 = arith.constant 0 : i32
    %c0_i32_1 = arith.constant 0 : i32
    return %c0_i32, %c0_i32_0 : i32, i32
  }
  func.func @transform_4(%arg0: i32, %arg1: i32) -> (i32, i32) {
    %c0_i32 = arith.constant 0 : i32
    %c0_i32_0 = arith.constant 0 : i32
    %c0_i32_1 = arith.constant 0 : i32
    return %c0_i32, %c0_i32_0 : i32, i32
  }
  func.func @transform_5(%arg0: i32, %arg1: i32) -> (i32, i32, i32, i32) {
    %c0_i32 = arith.constant 0 : i32
    %c0_i32_0 = arith.constant 0 : i32
    %c0_i32_1 = arith.constant 0 : i32
    return %arg0, %c0_i32, %arg1, %c0_i32_0 : i32, i32, i32, i32
  }
  func.func @transform_6(%arg0: i32, %arg1: i32) -> (i32, i32, i32, i32) {
    %c0_i32 = arith.constant 0 : i32
    %c0_i32_0 = arith.constant 0 : i32
    %c0_i32_1 = arith.constant 0 : i32
    return %arg0, %c0_i32, %arg1, %c0_i32_0 : i32, i32, i32, i32
  }
  func.func @transform_7(%arg0: i32, %arg1: i32) -> (i32, i32, i32, i32) {
    %c0_i32 = arith.constant 0 : i32
    %c0_i32_0 = arith.constant 0 : i32
    %c0_i32_1 = arith.constant 0 : i32
    return %arg0, %c0_i32, %arg1, %c0_i32_0 : i32, i32, i32, i32
  }
}

module attributes {stable_mosaic.version = 11 : i64} {
  func.func @ln_qkv_kernel(%arg0: i32, %arg1: i32, %arg2: memref<1x8x32xf32, #tpu.memory_space<vmem>>, %arg3: memref<1x32xf32, #tpu.memory_space<vmem>>, %arg4: memref<1x32xf32, #tpu.memory_space<vmem>>, %arg5: memref<32x96xf32, #tpu.memory_space<vmem>>, %arg6: memref<1x96xf32, #tpu.memory_space<vmem>>, %arg7: memref<1x4x8x8xf32, #tpu.memory_space<vmem>>, %arg8: memref<1x4x8x8xf32, #tpu.memory_space<vmem>>, %arg9: memref<1x4x8x8xf32, #tpu.memory_space<vmem>>) attributes {dimension_semantics = [#tpu.dimension_semantics<parallel>, #tpu.dimension_semantics<parallel>], iteration_bounds = array<i64: 2, 1>, scalar_prefetch = 0 : i64, scratch_operands = 0 : i64, tpu.core_type = #tpu.core_type<tc>, window_params = [{transform_indices = @transform_0, window_bounds = array<i64: 1, 8, 32>}, {pipeline_mode = #tpu.pipeline_mode<synchronous>, transform_indices = @transform_1, window_bounds = array<i64: 1, 32>}, {pipeline_mode = #tpu.pipeline_mode<synchronous>, transform_indices = @transform_2, window_bounds = array<i64: 1, 32>}, {pipeline_mode = #tpu.pipeline_mode<synchronous>, transform_indices = @transform_3, window_bounds = array<i64: 32, 96>}, {pipeline_mode = #tpu.pipeline_mode<synchronous>, transform_indices = @transform_4, window_bounds = array<i64: 1, 96>}, {transform_indices = @transform_5, window_bounds = array<i64: 1, 4, 8, 8>}, {transform_indices = @transform_6, window_bounds = array<i64: 1, 4, 8, 8>}, {transform_indices = @transform_7, window_bounds = array<i64: 1, 4, 8, 8>}]} {
    %c0 = arith.constant 0 : index
    %c0_0 = arith.constant 0 : index
    %c0_1 = arith.constant 0 : index
    %0 = vector.load %arg2[%c0, %c0_0, %c0_1] : memref<1x8x32xf32, #tpu.memory_space<vmem>>, vector<1x8x32xf32>
    %1 = vector.shape_cast %0 : vector<1x8x32xf32> to vector<8x32xf32>
    %c0_2 = arith.constant 0 : index
    %c0_3 = arith.constant 0 : index
    %2 = vector.load %arg3[%c0_2, %c0_3] : memref<1x32xf32, #tpu.memory_space<vmem>>, vector<1x32xf32>
    %3 = vector.shape_cast %2 : vector<1x32xf32> to vector<32xf32>
    %c0_4 = arith.constant 0 : index
    %c0_5 = arith.constant 0 : index
    %4 = vector.load %arg4[%c0_4, %c0_5] : memref<1x32xf32, #tpu.memory_space<vmem>>, vector<1x32xf32>
    %5 = vector.shape_cast %4 : vector<1x32xf32> to vector<32xf32>
    %cst = arith.constant dense<0.000000e+00> : vector<8xf32>
    %6 = vector.multi_reduction <add>, %1, %cst [1] : vector<8x32xf32> to vector<8xf32>
    %7 = vector.shape_cast %6 : vector<8xf32> to vector<8x1xf32>
    %cst_6 = arith.constant 3.200000e+01 : f32
    %8 = vector.broadcast %cst_6 : f32 to vector<8x1xf32>
    %9 = arith.divf %7, %8 : vector<8x1xf32>
    %10 = vector.broadcast %9 : vector<8x1xf32> to vector<8x32xf32>
    %11 = arith.subf %1, %10 : vector<8x32xf32>
    %12 = arith.mulf %11, %11 : vector<8x32xf32>
    %cst_7 = arith.constant dense<0.000000e+00> : vector<8xf32>
    %13 = vector.multi_reduction <add>, %12, %cst_7 [1] : vector<8x32xf32> to vector<8xf32>
    %14 = vector.shape_cast %13 : vector<8xf32> to vector<8x1xf32>
    %cst_8 = arith.constant 3.200000e+01 : f32
    %15 = vector.broadcast %cst_8 : f32 to vector<8x1xf32>
    %16 = arith.divf %14, %15 : vector<8x1xf32>
    %17 = vector.broadcast %9 : vector<8x1xf32> to vector<8x32xf32>
    %18 = arith.subf %1, %17 : vector<8x32xf32>
    %cst_9 = arith.constant 9.99999974E-6 : f32
    %19 = vector.broadcast %cst_9 : f32 to vector<8x1xf32>
    %20 = arith.addf %16, %19 : vector<8x1xf32>
    %21 = math.rsqrt %20 : vector<8x1xf32>
    %22 = vector.broadcast %21 : vector<8x1xf32> to vector<8x32xf32>
    %23 = arith.mulf %18, %22 : vector<8x32xf32>
    %24 = vector.shape_cast %3 : vector<32xf32> to vector<1x32xf32>
    %25 = vector.broadcast %24 : vector<1x32xf32> to vector<8x32xf32>
    %26 = arith.mulf %23, %25 : vector<8x32xf32>
    %27 = vector.shape_cast %5 : vector<32xf32> to vector<1x32xf32>
    %28 = vector.broadcast %27 : vector<1x32xf32> to vector<8x32xf32>
    %29 = arith.addf %26, %28 : vector<8x32xf32>
    %c0_10 = arith.constant 0 : index
    %c0_11 = arith.constant 0 : index
    %30 = vector.load %arg5[%c0_10, %c0_11] : memref<32x96xf32, #tpu.memory_space<vmem>>, vector<32x96xf32>
    %cst_12 = arith.constant dense<0.000000e+00> : vector<8x96xf32>
    %31 = tpu.matmul %29, %30, %cst_12 {dimension_numbers = #tpu.dot_dimension_numbers<[1], [0], [0], [1], [0, 0, 1, 1], [], []>} : vector<8x32xf32>, vector<32x96xf32>, vector<8x96xf32> -> vector<8x96xf32>
    %c0_13 = arith.constant 0 : index
    %c0_14 = arith.constant 0 : index
    %32 = vector.load %arg6[%c0_13, %c0_14] : memref<1x96xf32, #tpu.memory_space<vmem>>, vector<1x96xf32>
    %33 = vector.shape_cast %32 : vector<1x96xf32> to vector<96xf32>
    %34 = vector.shape_cast %33 : vector<96xf32> to vector<1x96xf32>
    %35 = vector.broadcast %34 : vector<1x96xf32> to vector<8x96xf32>
    %36 = arith.addf %31, %35 : vector<8x96xf32>
    %37 = vector.extract_strided_slice %36 {offsets = [0, 0], sizes = [8, 8], strides = [1, 1]} : vector<8x96xf32> to vector<8x8xf32>
    %c0_15 = arith.constant 0 : index
    %c0_16 = arith.constant 0 : index
    %c0_17 = arith.constant 0 : index
    %c0_18 = arith.constant 0 : index
    %38 = vector.load %arg7[%c0_15, %c0_16, %c0_17, %c0_18] : memref<1x4x8x8xf32, #tpu.memory_space<vmem>>, vector<1x1x8x8xf32>
    %39 = vector.shape_cast %38 : vector<1x1x8x8xf32> to vector<8x8xf32>
    %40 = vector.shape_cast %37 : vector<8x8xf32> to vector<1x1x8x8xf32>
    tpu.vector_store %arg7[%c0_15, %c0_16, %c0_17, %c0_18], %40 {strides = array<i32>} : memref<1x4x8x8xf32, #tpu.memory_space<vmem>>, vector<1x1x8x8xf32>,
    %41 = vector.extract_strided_slice %36 {offsets = [0, 32], sizes = [8, 8], strides = [1, 1]} : vector<8x96xf32> to vector<8x8xf32>
    %c0_19 = arith.constant 0 : index
    %c0_20 = arith.constant 0 : index
    %c0_21 = arith.constant 0 : index
    %c0_22 = arith.constant 0 : index
    %42 = vector.load %arg8[%c0_19, %c0_20, %c0_21, %c0_22] : memref<1x4x8x8xf32, #tpu.memory_space<vmem>>, vector<1x1x8x8xf32>
    %43 = vector.shape_cast %42 : vector<1x1x8x8xf32> to vector<8x8xf32>
    %44 = vector.shape_cast %41 : vector<8x8xf32> to vector<1x1x8x8xf32>
    tpu.vector_store %arg8[%c0_19, %c0_20, %c0_21, %c0_22], %44 {strides = array<i32>} : memref<1x4x8x8xf32, #tpu.memory_space<vmem>>, vector<1x1x8x8xf32>,
    %45 = vector.extract_strided_slice %36 {offsets = [0, 64], sizes = [8, 8], strides = [1, 1]} : vector<8x96xf32> to vector<8x8xf32>
    %c0_23 = arith.constant 0 : index
    %c0_24 = arith.constant 0 : index
    %c0_25 = arith.constant 0 : index
    %c0_26 = arith.constant 0 : index
    %46 = vector.load %arg9[%c0_23, %c0_24, %c0_25, %c0_26] : memref<1x4x8x8xf32, #tpu.memory_space<vmem>>, vector<1x1x8x8xf32>
    %47 = vector.shape_cast %46 : vector<1x1x8x8xf32> to vector<8x8xf32>
    %48 = vector.shape_cast %45 : vector<8x8xf32> to vector<1x1x8x8xf32>
    tpu.vector_store %arg9[%c0_23, %c0_24, %c0_25, %c0_26], %48 {strides = array<i32>} : memref<1x4x8x8xf32, #tpu.memory_space<vmem>>, vector<1x1x8x8xf32>,
    %49 = vector.extract_strided_slice %36 {offsets = [0, 8], sizes = [8, 8], strides = [1, 1]} : vector<8x96xf32> to vector<8x8xf32>
    %c0_27 = arith.constant 0 : index
    %c1 = arith.constant 1 : index
    %c0_28 = arith.constant 0 : index
    %c0_29 = arith.constant 0 : index
    %50 = vector.load %arg7[%c0_27, %c1, %c0_28, %c0_29] : memref<1x4x8x8xf32, #tpu.memory_space<vmem>>, vector<1x1x8x8xf32>
    %51 = vector.shape_cast %50 : vector<1x1x8x8xf32> to vector<8x8xf32>
    %52 = vector.shape_cast %49 : vector<8x8xf32> to vector<1x1x8x8xf32>
    tpu.vector_store %arg7[%c0_27, %c1, %c0_28, %c0_29], %52 {strides = array<i32>} : memref<1x4x8x8xf32, #tpu.memory_space<vmem>>, vector<1x1x8x8xf32>,
    %53 = vector.extract_strided_slice %36 {offsets = [0, 40], sizes = [8, 8], strides = [1, 1]} : vector<8x96xf32> to vector<8x8xf32>
    %c0_30 = arith.constant 0 : index
    %c1_31 = arith.constant 1 : index
    %c0_32 = arith.constant 0 : index
    %c0_33 = arith.constant 0 : index
    %54 = vector.load %arg8[%c0_30, %c1_31, %c0_32, %c0_33] : memref<1x4x8x8xf32, #tpu.memory_space<vmem>>, vector<1x1x8x8xf32>
    %55 = vector.shape_cast %54 : vector<1x1x8x8xf32> to vector<8x8xf32>
    %56 = vector.shape_cast %53 : vector<8x8xf32> to vector<1x1x8x8xf32>
    tpu.vector_store %arg8[%c0_30, %c1_31, %c0_32, %c0_33], %56 {strides = array<i32>} : memref<1x4x8x8xf32, #tpu.memory_space<vmem>>, vector<1x1x8x8xf32>,
    %57 = vector.extract_strided_slice %36 {offsets = [0, 72], sizes = [8, 8], strides = [1, 1]} : vector<8x96xf32> to vector<8x8xf32>
    %c0_34 = arith.constant 0 : index
    %c1_35 = arith.constant 1 : index
    %c0_36 = arith.constant 0 : index
    %c0_37 = arith.constant 0 : index
    %58 = vector.load %arg9[%c0_34, %c1_35, %c0_36, %c0_37] : memref<1x4x8x8xf32, #tpu.memory_space<vmem>>, vector<1x1x8x8xf32>
    %59 = vector.shape_cast %58 : vector<1x1x8x8xf32> to vector<8x8xf32>
    %60 = vector.shape_cast %57 : vector<8x8xf32> to vector<1x1x8x8xf32>
    tpu.vector_store %arg9[%c0_34, %c1_35, %c0_36, %c0_37], %60 {strides = array<i32>} : memref<1x4x8x8xf32, #tpu.memory_space<vmem>>, vector<1x1x8x8xf32>,
    %61 = vector.extract_strided_slice %36 {offsets = [0, 16], sizes = [8, 8], strides = [1, 1]} : vector<8x96xf32> to vector<8x8xf32>
    %c0_38 = arith.constant 0 : index
    %c2 = arith.constant 2 : index
    %c0_39 = arith.constant 0 : index
    %c0_40 = arith.constant 0 : index
    %62 = vector.load %arg7[%c0_38, %c2, %c0_39, %c0_40] : memref<1x4x8x8xf32, #tpu.memory_space<vmem>>, vector<1x1x8x8xf32>
    %63 = vector.shape_cast %62 : vector<1x1x8x8xf32> to vector<8x8xf32>
    %64 = vector.shape_cast %61 : vector<8x8xf32> to vector<1x1x8x8xf32>
    tpu.vector_store %arg7[%c0_38, %c2, %c0_39, %c0_40], %64 {strides = array<i32>} : memref<1x4x8x8xf32, #tpu.memory_space<vmem>>, vector<1x1x8x8xf32>,
    %65 = vector.extract_strided_slice %36 {offsets = [0, 48], sizes = [8, 8], strides = [1, 1]} : vector<8x96xf32> to vector<8x8xf32>
    %c0_41 = arith.constant 0 : index
    %c2_42 = arith.constant 2 : index
    %c0_43 = arith.constant 0 : index
    %c0_44 = arith.constant 0 : index
    %66 = vector.load %arg8[%c0_41, %c2_42, %c0_43, %c0_44] : memref<1x4x8x8xf32, #tpu.memory_space<vmem>>, vector<1x1x8x8xf32>
    %67 = vector.shape_cast %66 : vector<1x1x8x8xf32> to vector<8x8xf32>
    %68 = vector.shape_cast %65 : vector<8x8xf32> to vector<1x1x8x8xf32>
    tpu.vector_store %arg8[%c0_41, %c2_42, %c0_43, %c0_44], %68 {strides = array<i32>} : memref<1x4x8x8xf32, #tpu.memory_space<vmem>>, vector<1x1x8x8xf32>,
    %69 = vector.extract_strided_slice %36 {offsets = [0, 80], sizes = [8, 8], strides = [1, 1]} : vector<8x96xf32> to vector<8x8xf32>
    %c0_45 = arith.constant 0 : index
    %c2_46 = arith.constant 2 : index
    %c0_47 = arith.constant 0 : index
    %c0_48 = arith.constant 0 : index
    %70 = vector.load %arg9[%c0_45, %c2_46, %c0_47, %c0_48] : memref<1x4x8x8xf32, #tpu.memory_space<vmem>>, vector<1x1x8x8xf32>
    %71 = vector.shape_cast %70 : vector<1x1x8x8xf32> to vector<8x8xf32>
    %72 = vector.shape_cast %69 : vector<8x8xf32> to vector<1x1x8x8xf32>
    tpu.vector_store %arg9[%c0_45, %c2_46, %c0_47, %c0_48], %72 {strides = array<i32>} : memref<1x4x8x8xf32, #tpu.memory_space<vmem>>, vector<1x1x8x8xf32>,
    %73 = vector.extract_strided_slice %36 {offsets = [0, 24], sizes = [8, 8], strides = [1, 1]} : vector<8x96xf32> to vector<8x8xf32>
    %c0_49 = arith.constant 0 : index
    %c3 = arith.constant 3 : index
    %c0_50 = arith.constant 0 : index
    %c0_51 = arith.constant 0 : index
    %74 = vector.load %arg7[%c0_49, %c3, %c0_50, %c0_51] : memref<1x4x8x8xf32, #tpu.memory_space<vmem>>, vector<1x1x8x8xf32>
    %75 = vector.shape_cast %74 : vector<1x1x8x8xf32> to vector<8x8xf32>
    %76 = vector.shape_cast %73 : vector<8x8xf32> to vector<1x1x8x8xf32>
    tpu.vector_store %arg7[%c0_49, %c3, %c0_50, %c0_51], %76 {strides = array<i32>} : memref<1x4x8x8xf32, #tpu.memory_space<vmem>>, vector<1x1x8x8xf32>,
    %77 = vector.extract_strided_slice %36 {offsets = [0, 56], sizes = [8, 8], strides = [1, 1]} : vector<8x96xf32> to vector<8x8xf32>
    %c0_52 = arith.constant 0 : index
    %c3_53 = arith.constant 3 : index
    %c0_54 = arith.constant 0 : index
    %c0_55 = arith.constant 0 : index
    %78 = vector.load %arg8[%c0_52, %c3_53, %c0_54, %c0_55] : memref<1x4x8x8xf32, #tpu.memory_space<vmem>>, vector<1x1x8x8xf32>
    %79 = vector.shape_cast %78 : vector<1x1x8x8xf32> to vector<8x8xf32>
    %80 = vector.shape_cast %77 : vector<8x8xf32> to vector<1x1x8x8xf32>
    tpu.vector_store %arg8[%c0_52, %c3_53, %c0_54, %c0_55], %80 {strides = array<i32>} : memref<1x4x8x8xf32, #tpu.memory_space<vmem>>, vector<1x1x8x8xf32>,
    %81 = vector.extract_strided_slice %36 {offsets = [0, 88], sizes = [8, 8], strides = [1, 1]} : vector<8x96xf32> to vector<8x8xf32>
    %c0_56 = arith.constant 0 : index
    %c3_57 = arith.constant 3 : index
    %c0_58 = arith.constant 0 : index
    %c0_59 = arith.constant 0 : index
    %82 = vector.load %arg9[%c0_56, %c3_57, %c0_58, %c0_59] : memref<1x4x8x8xf32, #tpu.memory_space<vmem>>, vector<1x1x8x8xf32>
    %83 = vector.shape_cast %82 : vector<1x1x8x8xf32> to vector<8x8xf32>
    %84 = vector.shape_cast %81 : vector<8x8xf32> to vector<1x1x8x8xf32>
    tpu.vector_store %arg9[%c0_56, %c3_57, %c0_58, %c0_59], %84 {strides = array<i32>} : memref<1x4x8x8xf32, #tpu.memory_space<vmem>>, vector<1x1x8x8xf32>,
    return
  }
  func.func @transform_0(%arg0: i32, %arg1: i32) -> (i32, i32, i32) {
    %c0_i32 = arith.constant 0 : i32
    %c0_i32_0 = arith.constant 0 : i32
    return %arg0, %arg1, %c0_i32 : i32, i32, i32
  }
  func.func @transform_1(%arg0: i32, %arg1: i32) -> (i32, i32) {
    %c0_i32 = arith.constant 0 : i32
    %c0_i32_0 = arith.constant 0 : i32
    %c0_i32_1 = arith.constant 0 : i32
    return %c0_i32, %c0_i32_0 : i32, i32
  }
  func.func @transform_2(%arg0: i32, %arg1: i32) -> (i32, i32) {
    %c0_i32 = arith.constant 0 : i32
    %c0_i32_0 = arith.constant 0 : i32
    %c0_i32_1 = arith.constant 0 : i32
    return %c0_i32, %c0_i32_0 : i32, i32
  }
  func.func @transform_3(%arg0: i32, %arg1: i32) -> (i32, i32) {
    %c0_i32 = arith.constant 0 : i32
    %c0_i32_0 = arith.constant 0 : i32
    %c0_i32_1 = arith.constant 0 : i32
    return %c0_i32, %c0_i32_0 : i32, i32
  }
  func.func @transform_4(%arg0: i32, %arg1: i32) -> (i32, i32) {
    %c0_i32 = arith.constant 0 : i32
    %c0_i32_0 = arith.constant 0 : i32
    %c0_i32_1 = arith.constant 0 : i32
    return %c0_i32, %c0_i32_0 : i32, i32
  }
  func.func @transform_5(%arg0: i32, %arg1: i32) -> (i32, i32, i32, i32) {
    %c0_i32 = arith.constant 0 : i32
    %c0_i32_0 = arith.constant 0 : i32
    %c0_i32_1 = arith.constant 0 : i32
    return %arg0, %c0_i32, %arg1, %c0_i32_0 : i32, i32, i32, i32
  }
  func.func @transform_6(%arg0: i32, %arg1: i32) -> (i32, i32, i32, i32) {
    %c0_i32 = arith.constant 0 : i32
    %c0_i32_0 = arith.constant 0 : i32
    %c0_i32_1 = arith.constant 0 : i32
    return %arg0, %c0_i32, %arg1, %c0_i32_0 : i32, i32, i32, i32
  }
  func.func @transform_7(%arg0: i32, %arg1: i32) -> (i32, i32, i32, i32) {
    %c0_i32 = arith.constant 0 : i32
    %c0_i32_0 = arith.constant 0 : i32
    %c0_i32_1 = arith.constant 0 : i32
    return %arg0, %c0_i32, %arg1, %c0_i32_0 : i32, i32, i32, i32
  }
}

</mosaic_0001>

<llo_original>
// kernel: tpu_custom_call.1
$region0: #{tpu_custom_call.1}
  #allocation0 [shape = 'u32[]', space=smem, size = 0x4, offset = 0x4, fixed_abs, tag = 'smem constant byte address 0x4 - core index']
  #allocation1 [shape = 'u32[144,128]{1,0:T(1,128)}', space=vmem, size = 0x12000, scoped, tag = 'internal scratch']
  %s0 = inlined_call_operand.hbm [shape: f32[2,8,32], index: 0, kind: input, shape index: {}]
  %s1 = inlined_call_operand.vmem [shape: f32[1,32], index: 1, kind: input, shape index: {}]
  %s2 = inlined_call_operand.vmem [shape: f32[1,32], index: 2, kind: input, shape index: {}]
  %s3 = inlined_call_operand.hbm [shape: f32[32,96], index: 3, kind: input, shape index: {}]
  %s4 = inlined_call_operand.vmem [shape: f32[1,96], index: 4, kind: input, shape index: {}]
  %s5 = inlined_call_operand.hbm [shape: f32[2,4,8,8], index: 5, kind: output, shape index: {0}]
  %s6 = inlined_call_operand.hbm [shape: f32[2,4,8,8], index: 6, kind: output, shape index: {1}]
  %s7 = inlined_call_operand.hbm [shape: f32[2,4,8,8], index: 7, kind: output, shape index: {2}]
  %8 = xla_tuple %s5, %s6, %s7
  %s9 = sld [smem:[#allocation0]]
  $region77: #{tpu_custom_call.1} parent=0
    _
  %s11 = ssub.s32 1, %s9
  %s12 = scalar_select 0, %s11, %s9
  $region1: #{tpu_custom_call.1} parent=0
    #allocation2 [shape = 'u8[8192]{0}', space=vmem, size = 0x2000, scoped, tag = 'input window, operand 0']
    #allocation3 [shape = 's32[2]{0}', space=sflag, size = 0x8, scoped, tag = 'scoped memory for tpu_custom_call.1']
    #allocation4 [shape = 's32[2]{0}', space=sflag, size = 0x8, scoped, tag = 'scoped memory for tpu_custom_call.1']
    #allocation5 [shape = 'u8[16384]{0}', space=vmem, size = 0x4000, scoped, tag = 'input window, operand 3, single buffered']
    #allocation6 [shape = 's32[1]{0}', space=sflag, size = 0x4, scoped, tag = 'scoped memory for tpu_custom_call.1']
    #allocation7 [shape = 'u8[32768]{0}', space=vmem, size = 0x8000, scoped, tag = 'output window, operand 0']
    #allocation8 [shape = 'u8[32768]{0}', space=vmem, size = 0x8000, scoped, tag = 'output window, operand 1']
    #allocation9 [shape = 's32[2]{0}', space=sflag, size = 0x8, scoped, tag = 'scoped memory for tpu_custom_call.1']
    #allocation10 [shape = 'u8[32768]{0}', space=vmem, size = 0x8000, scoped, tag = 'output window, operand 2']
    %13 = vsyncpa [#allocation3], 0
    %s14 = scalar_lea.sflag [#allocation3], 1
    %15 = vsyncpa %s14, 0
    %16 = vsyncpa [#allocation6], 0
    %17 = vsyncpa [#allocation4], 0
    %s18 = scalar_lea.sflag [#allocation4], 1
    %19 = vsyncpa %s18, 0
    %20 = vsyncpa [#allocation9], 0
    %s21 = scalar_lea.sflag [#allocation9], 1
    %22 = vsyncpa %s21, 0
    loop: start=0, step=1, limit=4
    $region2: #{tpu_custom_call.1} parent=1 // loop_pre_header
      _
    $region3: #{tpu_custom_call.1} parent=1 // loop_header
      %s24 = sphi 0, %s28
      %p25 = scmp.ge.s32.totalorder %s24, 4
      %s31 = sphi 0, %s43
      %s32 = sphi 0, %s39
      %s33 = sphi 0, %s31
      %s34 = sphi 0, %s32
      %s35 = sphi 0, %s33
      %s36 = sphi 0, %s34
      %s48 = sphi 0, %s50
      %s51 = sphi 0, %s48
      %s52 = sphi 0, %s51
      %s68 = sphi 0, %s52
      %s72 = sphi 0, %s72
      %s74 = sphi 0, %s72
      %s75 = sphi 0, %s74
      %s89 = sphi 0, %s75
      %s93 = sphi 0, %s93
      %s95 = sphi 0, %s93
      %s96 = sphi 0, %s95
      %s110 = sphi 0, %s96
      %s114 = sphi 0, %s114
      %s116 = sphi 0, %s114
      %s117 = sphi 0, %s116
      %s131 = sphi 0, %s117
      %s135 = sphi 0, %s135
      %s137 = sphi 0, %s135
      %s138 = sphi 0, %s137
      %s152 = sphi 0, %s138
      %s160 = sphi 0, %s162
      %s163 = sphi 0, %s160
      %s164 = sphi 0, %s163
      %s180 = sphi 0, %s164
      %s188 = sphi 0, %s190
      %s191 = sphi 0, %s188
      %s192 = sphi 0, %s191
      %s208 = sphi 0, %s192
      %s216 = sphi 0, %s218
      %s219 = sphi 0, %s216
      %s220 = sphi 0, %s219
      %s236 = sphi 0, %s220
    $region4: #{tpu_custom_call.1} parent=1 // loop_header_branch
      %27 = sbr.rel (%p25) target = $region8
    $region5: #{tpu_custom_call.1} parent=1 // loop_body
      %s29 = ssub.s32 %s24, 1
      %s30 = ssub.s32 %s24, 2
      %s37 = sadd.s32 1, %s32
      %p38 = scmp.ge.s32.totalorder %s37, 1
      %s39 = scalar_select %p38, 0, %s37
      %s40 = sadd.s32 1, %s31
      %s41 = scalar_select %p38, %s40, %s31
      %p42 = scmp.ge.s32.totalorder %s41, 2
      %s43 = scalar_select %p42, 0, %s41
      %s44 = ssub.s32 %s31, %s43
      %s45 = ssub.s32 %s32, %s39
      %s46 = sor.u32 %s44, %s45
      %p47 = scmp.eq.s32.totalorder %s46, 0
      %s49 = sadd.s32 %s48, 1
      %s50 = scalar_select %p47, %s48, %s49
      %p53 = pneg %p47
      %p54 = scmp.eq.s32.totalorder %s24, 1
      %p55 = por %p53, %p54
      %p56 = scmp.ne.s32.totalorder %s48, %s51
      %p57 = scmp.eq.s32.totalorder %s24, 0
      %p58 = por %p56, %p57
      %p59 = scmp.ne.s32.totalorder %s48, %s51
      %p60 = scmp.eq.s32.totalorder %s29, 1
      %p61 = por %p59, %p60
      %p62 = scmp.ne.s32.totalorder %s51, %s52
      %p63 = scmp.eq.s32.totalorder %s29, 0
      %p64 = por %p62, %p63
      %p65 = scmp.ne.s32.totalorder %s51, %s52
      %p66 = scmp.eq.s32.totalorder %s30, 1
      %p67 = por %p65, %p66
      %p69 = scmp.ne.s32.totalorder %s52, %s68
      %p70 = scmp.eq.s32.totalorder %s30, 0
      %p71 = por %p69, %p70
      %s73 = sadd.s32 %s72, 1
      %p76 = scmp.eq.s32.totalorder %s24, 1
      %p77 = scmp.ne.s32.totalorder %s72, %s74
      %p78 = scmp.eq.s32.totalorder %s24, 0
      %p79 = por %p77, %p78
      %p80 = scmp.ne.s32.totalorder %s72, %s74
      %p81 = scmp.eq.s32.totalorder %s29, 1
      %p82 = por %p80, %p81
      %p83 = scmp.ne.s32.totalorder %s74, %s75
      %p84 = scmp.eq.s32.totalorder %s29, 0
      %p85 = por %p83, %p84
      %p86 = scmp.ne.s32.totalorder %s74, %s75
      %p87 = scmp.eq.s32.totalorder %s30, 1
      %p88 = por %p86, %p87
      %p90 = scmp.ne.s32.totalorder %s75, %s89
      %p91 = scmp.eq.s32.totalorder %s30, 0
      %p92 = por %p90, %p91
      %s94 = sadd.s32 %s93, 1
      %p97 = scmp.eq.s32.totalorder %s24, 1
      %p98 = scmp.ne.s32.totalorder %s93, %s95
      %p99 = scmp.eq.s32.totalorder %s24, 0
      %p100 = por %p98, %p99
      %p101 = scmp.ne.s32.totalorder %s93, %s95
      %p102 = scmp.eq.s32.totalorder %s29, 1
      %p103 = por %p101, %p102
      %p104 = scmp.ne.s32.totalorder %s95, %s96
      %p105 = scmp.eq.s32.totalorder %s29, 0
      %p106 = por %p104, %p105
      %p107 = scmp.ne.s32.totalorder %s95, %s96
      %p108 = scmp.eq.s32.totalorder %s30, 1
      %p109 = por %p107, %p108
      %p111 = scmp.ne.s32.totalorder %s96, %s110
      %p112 = scmp.eq.s32.totalorder %s30, 0
      %p113 = por %p111, %p112
      %s115 = sadd.s32 %s114, 1
      %p118 = scmp.eq.s32.totalorder %s24, 1
      %p119 = scmp.ne.s32.totalorder %s114, %s116
      %p120 = scmp.eq.s32.totalorder %s24, 0
      %p121 = por %p119, %p120
      %p122 = scmp.ne.s32.totalorder %s114, %s116
      %p123 = scmp.eq.s32.totalorder %s29, 1
      %p124 = por %p122, %p123
      %p125 = scmp.ne.s32.totalorder %s116, %s117
      %p126 = scmp.eq.s32.totalorder %s29, 0
      %p127 = por %p125, %p126
      %p128 = scmp.ne.s32.totalorder %s116, %s117
      %p129 = scmp.eq.s32.totalorder %s30, 1
      %p130 = por %p128, %p129
      %p132 = scmp.ne.s32.totalorder %s117, %s131
      %p133 = scmp.eq.s32.totalorder %s30, 0
      %p134 = por %p132, %p133
      %s136 = sadd.s32 %s135, 1
      %p139 = scmp.eq.s32.totalorder %s24, 1
      %p140 = scmp.ne.s32.totalorder %s135, %s137
      %p141 = scmp.eq.s32.totalorder %s24, 0
      %p142 = por %p140, %p141
      %p143 = scmp.ne.s32.totalorder %s135, %s137
      %p144 = scmp.eq.s32.totalorder %s29, 1
      %p145 = por %p143, %p144
      %p146 = scmp.ne.s32.totalorder %s137, %s138
      %p147 = scmp.eq.s32.totalorder %s29, 0
      %p148 = por %p146, %p147
      %p149 = scmp.ne.s32.totalorder %s137, %s138
      %p150 = scmp.eq.s32.totalorder %s30, 1
      %p151 = por %p149, %p150
      %p153 = scmp.ne.s32.totalorder %s138, %s152
      %p154 = scmp.eq.s32.totalorder %s30, 0
      %p155 = por %p153, %p154
      %s156 = ssub.s32 %s31, %s43
      %s157 = ssub.s32 %s32, %s39
      %s158 = sor.u32 %s156, %s157
      %p159 = scmp.eq.s32.totalorder %s158, 0
      %s161 = sadd.s32 %s160, 1
      %s162 = scalar_select %p159, %s160, %s161
      %p165 = pneg %p159
      %p166 = scmp.eq.s32.totalorder %s24, 1
      %p167 = por %p165, %p166
      %p168 = scmp.ne.s32.totalorder %s160, %s163
      %p169 = scmp.eq.s32.totalorder %s24, 0
      %p170 = por %p168, %p169
      %p171 = scmp.ne.s32.totalorder %s160, %s163
      %p172 = scmp.eq.s32.totalorder %s29, 1
      %p173 = por %p171, %p172
      %p174 = scmp.ne.s32.totalorder %s163, %s164
      %p175 = scmp.eq.s32.totalorder %s29, 0
      %p176 = por %p174, %p175
      %p177 = scmp.ne.s32.totalorder %s163, %s164
      %p178 = scmp.eq.s32.totalorder %s30, 1
      %p179 = por %p177, %p178
      %p181 = scmp.ne.s32.totalorder %s164, %s180
      %p182 = scmp.eq.s32.totalorder %s30, 0
      %p183 = por %p181, %p182
      %s184 = ssub.s32 %s31, %s43
      %s185 = ssub.s32 %s32, %s39
      %s186 = sor.u32 %s184, %s185
      %p187 = scmp.eq.s32.totalorder %s186, 0
      %s189 = sadd.s32 %s188, 1
      %s190 = scalar_select %p187, %s188, %s189
      %p193 = pneg %p187
      %p194 = scmp.eq.s32.totalorder %s24, 1
      %p195 = por %p193, %p194
      %p196 = scmp.ne.s32.totalorder %s188, %s191
      %p197 = scmp.eq.s32.totalorder %s24, 0
      %p198 = por %p196, %p197
      %p199 = scmp.ne.s32.totalorder %s188, %s191
      %p200 = scmp.eq.s32.totalorder %s29, 1
      %p201 = por %p199, %p200
      %p202 = scmp.ne.s32.totalorder %s191, %s192
      %p203 = scmp.eq.s32.totalorder %s29, 0
      %p204 = por %p202, %p203
      %p205 = scmp.ne.s32.totalorder %s191, %s192
      %p206 = scmp.eq.s32.totalorder %s30, 1
      %p207 = por %p205, %p206
      %p209 = scmp.ne.s32.totalorder %s192, %s208
      %p210 = scmp.eq.s32.totalorder %s30, 0
      %p211 = por %p209, %p210
      %s212 = ssub.s32 %s31, %s43
      %s213 = ssub.s32 %s32, %s39
      %s214 = sor.u32 %s212, %s213
      %p215 = scmp.eq.s32.totalorder %s214, 0
      %s217 = sadd.s32 %s216, 1
      %s218 = scalar_select %p215, %s216, %s217
      %p221 = pneg %p215
      %p222 = scmp.eq.s32.totalorder %s24, 1
      %p223 = por %p221, %p222
      %p224 = scmp.ne.s32.totalorder %s216, %s219
      %p225 = scmp.eq.s32.totalorder %s24, 0
      %p226 = por %p224, %p225
      %p227 = scmp.ne.s32.totalorder %s216, %s219
      %p228 = scmp.eq.s32.totalorder %s29, 1
      %p229 = por %p227, %p228
      %p230 = scmp.ne.s32.totalorder %s219, %s220
      %p231 = scmp.eq.s32.totalorder %s29, 0
      %p232 = por %p230, %p231
      %p233 = scmp.ne.s32.totalorder %s219, %s220
      %p234 = scmp.eq.s32.totalorder %s30, 1
      %p235 = por %p233, %p234
      %p237 = scmp.ne.s32.totalorder %s220, %s236
      %p238 = scmp.eq.s32.totalorder %s30, 0
      %p239 = por %p237, %p238
      %p240 = scmp.le.s32.totalorder 1, %s24
      %p241 = scmp.lt.s32.totalorder %s24, 3
      %p242 = pnand %p240, %p241
      %p243 = pneg %p242
      // Predicated region
      $region9: #{tpu_custom_call.1} parent=5 // pred_check
        _
      $region10: #{tpu_custom_call.1} parent=5 // pred_check_branch
        %245 = sbr.rel (%p242) target = $region12
      $region11: #{tpu_custom_call.1} parent=5 // pred_region
        %s246 = ssub.s32 %s24, 1
        // Predicated region
        $region13: #{tpu_custom_call.1} parent=11 // pred_check
          %p247 = pneg %p85
        $region14: #{tpu_custom_call.1} parent=11 // pred_check_branch
          %249 = sbr.rel (%p247) target = $region16
        $region15: #{tpu_custom_call.1} parent=11 // pred_region
          _
        $region16: #{tpu_custom_call.1} parent=11 // pred_fallthru
          _
        // Predicated region
        $region17: #{tpu_custom_call.1} parent=11 // pred_check
          %p250 = pneg %p106
        $region18: #{tpu_custom_call.1} parent=11 // pred_check_branch
          %252 = sbr.rel (%p250) target = $region20
        $region19: #{tpu_custom_call.1} parent=11 // pred_region
          _
        $region20: #{tpu_custom_call.1} parent=11 // pred_fallthru
          _
        // Predicated region
        $region21: #{tpu_custom_call.1} parent=11 // pred_check
          %p253 = pneg %p127
        $region22: #{tpu_custom_call.1} parent=11 // pred_check_branch
          %255 = sbr.rel (%p253) target = $region24
        $region23: #{tpu_custom_call.1} parent=11 // pred_region
          %s257 = ssub.s32 512, 512
          %258 = vsyncadd [#allocation6], %s257
          %s259 = sshll.u32 [#allocation5], 4
          %s260 = int_to_ptr.vmem [resolvable:$true] %s259
          %265 = dma.hbm_to_vmem [thread:$0]  %s3, 512, %s260, [#allocation6], 128, 128, 8
        $region24: #{tpu_custom_call.1} parent=11 // pred_fallthru
          _
        // Predicated region
        $region25: #{tpu_custom_call.1} parent=11 // pred_check
          %p266 = pneg %p148
        $region26: #{tpu_custom_call.1} parent=11 // pred_check_branch
          %268 = sbr.rel (%p266) target = $region28
        $region27: #{tpu_custom_call.1} parent=11 // pred_region
          _
        $region28: #{tpu_custom_call.1} parent=11 // pred_fallthru
          _
      $region12: #{tpu_custom_call.1} parent=5 // pred_fallthru
        _
      %p269 = scmp.lt.s32.totalorder %s24, 2
      // Predicated region
      $region29: #{tpu_custom_call.1} parent=5 // pred_check
        %p270 = pneg %p269
      $region30: #{tpu_custom_call.1} parent=5 // pred_check_branch
        %272 = sbr.rel (%p270) target = $region32
      $region31: #{tpu_custom_call.1} parent=5 // pred_region
        // Predicated region
        $region33: #{tpu_custom_call.1} parent=31 // pred_check
          %p273 = pneg %p58
        $region34: #{tpu_custom_call.1} parent=31 // pred_check_branch
          %275 = sbr.rel (%p273) target = $region36
        $region35: #{tpu_custom_call.1} parent=31 // pred_region
          %s276 = sand.u32 %s48, 1
          %s277 = scalar_lea.sflag [#allocation3], %s276
          %s278 = sand.u32 %s48, 1
          %s279 = smul.addr %s278, 8
          %s280 = scalar_lea.vmem [#allocation2], %s279
          %s282 = ssub.s32 128, 128
          %283 = vsyncadd %s277, %s282
          %s284 = sadd.s32 %s32, %s31
          %s285 = smul.addr %s284, 128
          %s286 = scalar_lea.hbm %s0, %s285
          %s288 = sshll.u32 %s280, 4
          %s289 = int_to_ptr.vmem [resolvable:$true] %s288
          %291 = dma.hbm_to_vmem [thread:$0]  %s286, 128, %s289, %s277
        $region36: #{tpu_custom_call.1} parent=31 // pred_fallthru
          _
      $region32: #{tpu_custom_call.1} parent=5 // pred_fallthru
        _
      %p292 = scmp.le.s32.totalorder 1, %s24
      %p293 = scmp.lt.s32.totalorder %s24, 3
      %p294 = pnand %p292, %p293
      %p295 = pneg %p294
      // Predicated region
      $region37: #{tpu_custom_call.1} parent=5 // pred_check
        _
      $region38: #{tpu_custom_call.1} parent=5 // pred_check_branch
        %297 = sbr.rel (%p294) target = $region40
      $region39: #{tpu_custom_call.1} parent=5 // pred_region
        %s298 = ssub.s32 %s24, 1
        %s299 = sand.u32 %s51, 1
        %s300 = scalar_lea.sflag [#allocation3], %s299
        %s301 = sand.u32 %s51, 1
        %s302 = smul.addr %s301, 8
        %s303 = scalar_lea.vmem [#allocation2], %s302
        // Predicated region
        $region41: #{tpu_custom_call.1} parent=39 // pred_check
          %p304 = pneg %p64
        $region42: #{tpu_custom_call.1} parent=39 // pred_check_branch
          %306 = sbr.rel (%p304) target = $region44
        $region43: #{tpu_custom_call.1} parent=39 // pred_region
          %307 = dma.done %s300, 128
        $region44: #{tpu_custom_call.1} parent=39 // pred_fallthru
          _
        // Predicated region
        $region45: #{tpu_custom_call.1} parent=39 // pred_check
          %p308 = pneg %p127
        $region46: #{tpu_custom_call.1} parent=39 // pred_check_branch
          %310 = sbr.rel (%p308) target = $region48
        $region47: #{tpu_custom_call.1} parent=39 // pred_region
          %311 = dma.done [#allocation6], 512
        $region48: #{tpu_custom_call.1} parent=39 // pred_fallthru
          _
        %s312 = sand.u32 %s51, 1
        %s313 = scalar_lea.sflag [#allocation3], %s312
        %s314 = sand.u32 %s51, 1
        %s315 = smul.addr %s314, 8
        %s316 = scalar_lea.vmem [#allocation2], %s315
        %p317 = pneg %p64
        %p318 = pneg %p61
        %p319 = pneg %p85
        %p320 = pneg %p82
        %p321 = pneg %p106
        %p322 = pneg %p103
        %p323 = pneg %p127
        %p324 = pneg %p124
        %p325 = pneg %p148
        %p326 = pneg %p145
        %p327 = pneg %p176
        %p328 = pneg %p173
        %s329 = sand.u32 %s163, 1
        %s330 = scalar_lea.sflag [#allocation4], %s329
        %s331 = sand.u32 %s163, 1
        %s332 = smul.addr %s331, 32
        %s333 = scalar_lea.vmem [#allocation7], %s332
        %p334 = pneg %p204
        %p335 = pneg %p201
        %s336 = sand.u32 %s29, 1
        %s337 = scalar_lea.sflag [#allocation9], %s336
        %s338 = sand.u32 %s191, 1
        %s339 = smul.addr %s338, 32
        %s340 = scalar_lea.vmem [#allocation8], %s339
        %p341 = pneg %p232
        %p342 = pneg %p229
        %s343 = sand.u32 %s29, 1
        %s344 = scalar_lea.sflag [#allocation9], %s343
        %s345 = sand.u32 %s219, 1
        %s346 = smul.addr %s345, 32
        %s347 = scalar_lea.vmem [#allocation10], %s346
        %v348 = vld [vmem:[%s303] sm:$0xff]
        %v349 = vld [vmem:[%s1] sm:$0x1]
        %v350 = vld [vmem:[%s2] sm:$0x1]
        %vm351 = vcmask 261120
        %v352 = vsel %vm351, %v348, 0.0
        %353 = vadd.xlane.f32.xlu0 %v352
        %v354 = vpop.xlane.xlu0 %353
        %v355 = vrcp.pop 32.0
        %v356 = vmul.f32 %v354, %v355
        %v357 = vsub.f32 %v348, %v356
        %v358 = vmul.f32 %v357, %v357
        %v359 = vsel %vm351, %v358, 0.0
        %360 = vadd.xlane.f32.xlu0 %v359
        %v361 = vpop.xlane.xlu0 %360
        %v362 = vmul.f32 %v361, %v355
        %v363 = vadd.f32 %v362, 1e-05
        %v364 = vrsqrt.pop %v363
        %v365 = vmul.f32 %v357, %v364
        %v367 = vlaneseq
        %v368 = vshrl.u32 %v367, 7
        %v369 = vsub.s32 0, %v368
        %v370 = vrot.slane %v349, %v369
        %v372 = vmul.f32 %v365, %v370
        %v374 = vlaneseq
        %v375 = vshrl.u32 %v374, 7
        %v376 = vsub.s32 0, %v375
        %v377 = vrot.slane %v350, %v376
        %v379 = vadd.f32 %v372, %v377
        %v380 = vld [vmem:[#allocation5] sm:$0xff]
        %v381 = vld [vmem:[#allocation5 + $0x8] sm:$0xff]
        %v382 = vld [vmem:[#allocation5 + $0x10] sm:$0xff]
        %v383 = vld [vmem:[#allocation5 + $0x18] sm:$0xff]
        %v384 = vld [vmem:[%s4] sm:$0x1]
        %v386 = vlaneseq
        %v387 = vshrl.u32 %v386, 7
        %v388 = vsub.s32 0, %v387
        %v389 = vrot.slane %v384, %v388
        %v392 = vsel %vm351, %v379, 0
        %394 = vmatprep.subr.mxu0 0.0
        %395 = vmatpush1.msra.mxu0 %v380
        %396 = vmatprep.subr.mxu0 0.0
        %397 = vmatpush1.msra.mxu0 %v381
        %398 = vmatprep.subr.mxu0 0.0
        %399 = vmatpush1.msra.mxu0 %v382
        %400 = vmatprep.subr.mxu0 0.0
        %401 = vmatpush1.msra.mxu0 %v383
        %402 = vmatprep.subr.mxu0 0.0
        %403 = vmatpush1.msra.mxu0 0.0
        %404 = vmatprep.subr.mxu0 0.0
        %405 = vmatpush1.msra.mxu0 0.0
        %406 = vmatprep.subr.mxu0 0.0
        %407 = vmatpush1.msra.mxu0 0.0
        %408 = vmatprep.subr.mxu0 0.0
        %409 = vmatpush1.msra.mxu0 0.0
        %410 = vmatprep.subr.mxu0 0.0
        %411 = vmatpush1.msra.mxu0 0.0
        %412 = vmatprep.subr.mxu0 0.0
        %413 = vmatpush1.msra.mxu0 0.0
        %414 = vmatprep.subr.mxu0 0.0
        %415 = vmatpush1.msra.mxu0 0.0
        %416 = vmatprep.subr.mxu0 0.0
        %417 = vmatpush1.msra.mxu0 0.0
        %418 = vmatprep.subr.mxu0 0.0
        %419 = vmatpush1.msra.mxu0 0.0
        %420 = vmatprep.subr.mxu0 0.0
        %421 = vmatpush1.msra.mxu0 0.0
        %422 = vmatprep.subr.mxu0 0.0
        %423 = vmatpush1.msra.mxu0 0.0
        %424 = vmatprep.subr.mxu0 0.0
        %425 = vmatpush1.msra.mxu0 0.0
        %426 = vmatprep.subr.mxu0 0.0
        %427 = vmatpush1.msra.mxu0 0.0
        %428 = vmatprep.subr.mxu0 0.0
        %429 = vmatpush1.msra.mxu0 0.0
        %430 = vmatprep.subr.mxu0 0.0
        %431 = vmatpush1.msra.mxu0 0.0
        %432 = vmatprep.subr.mxu0 0.0
        %433 = vmatpush1.msra.mxu0 0.0
        %434 = vmatprep.subr.mxu0 0.0
        %435 = vmatpush1.msra.mxu0 0.0
        %436 = vmatprep.subr.mxu0 0.0
        %437 = vmatpush1.msra.mxu0 0.0
        %438 = vmatprep.subr.mxu0 0.0
        %439 = vmatpush1.msra.mxu0 0.0
        %440 = vmatprep.subr.mxu0 0.0
        %441 = vmatpush1.msra.mxu0 0.0
        %442 = vmatprep.subr.mxu0 0.0
        %443 = vmatpush1.msra.mxu0 0.0
        %444 = vmatprep.subr.mxu0 0.0
        %445 = vmatpush1.msra.mxu0 0.0
        %446 = vmatprep.subr.mxu0 0.0
        %447 = vmatpush1.msra.mxu0 0.0
        %448 = vmatprep.subr.mxu0 0.0
        %449 = vmatpush1.msra.mxu0 0.0
        %450 = vmatprep.subr.mxu0 0.0
        %451 = vmatpush1.msra.mxu0 0.0
        %452 = vmatprep.subr.mxu0 0.0
        %453 = vmatpush1.msra.mxu0 0.0
        %454 = vmatprep.subr.mxu0 0.0
        %455 = vmatpush1.msra.mxu0 0.0
        %456 = vmatprep.subr.mxu0 0.0
        %457 = vmatpush1.msra.mxu0 0.0
        %458 = vmatprep.mubr.f32.mxu0 0.0
        %459 = vmatmul.mubr.f32.gmra.mrb[0].mxu0 %v392
        %v460 = vpop.f32.mrb[0].mxu0
        %v461 = vadd.f32 %v389, %v460
        %v462 = vpop.f32.mrb[0].mxu0
        %463 = vdwg.mxu0
        %vm464 = vcmask 64512
        %465 = vst.msk [vmem:[%s333] sm:$0xff] %vm464, %v461
        %467 = vrot.lane.b32.xlu0 %v461, 96
        %v468 = vpop.permute.xlu0 %467
        %470 = vst.msk [vmem:[%s340] sm:$0xff] %vm464, %v468
        %471 = vrot.lane.b32.xlu0 %v461, 64
        %v472 = vpop.permute.xlu0 %471
        %474 = vst.msk [vmem:[%s347] sm:$0xff] %vm464, %v472
        %475 = vrot.lane.b32.xlu0 %v461, 120
        %v476 = vpop.permute.xlu0 %475
        %s478 = scalar_lea.vmem %s333, 8 [#allocation7]
        %479 = vst.msk [vmem:[%s478] sm:$0xff] %vm464, %v476
        %480 = vrot.lane.b32.xlu0 %v461, 88
        %v481 = vpop.permute.xlu0 %480
        %s483 = scalar_lea.vmem %s340, 8 [#allocation8]
        %484 = vst.msk [vmem:[%s483] sm:$0xff] %vm464, %v481
        %485 = vrot.lane.b32.xlu0 %v461, 56
        %v486 = vpop.permute.xlu0 %485
        %s488 = scalar_lea.vmem %s347, 8 [#allocation10]
        %489 = vst.msk [vmem:[%s488] sm:$0xff] %vm464, %v486
        %490 = vrot.lane.b32.xlu0 %v461, 112
        %v491 = vpop.permute.xlu0 %490
        %s493 = scalar_lea.vmem %s333, 16 [#allocation7]
        %494 = vst.msk [vmem:[%s493] sm:$0xff] %vm464, %v491
        %495 = vrot.lane.b32.xlu0 %v461, 80
        %v496 = vpop.permute.xlu0 %495
        %s498 = scalar_lea.vmem %s340, 16 [#allocation8]
        %499 = vst.msk [vmem:[%s498] sm:$0xff] %vm464, %v496
        %500 = vrot.lane.b32.xlu0 %v461, 48
        %v501 = vpop.permute.xlu0 %500
        %s503 = scalar_lea.vmem %s347, 16 [#allocation10]
        %504 = vst.msk [vmem:[%s503] sm:$0xff] %vm464, %v501
        %505 = vrot.lane.b32.xlu0 %v461, 104
        %v506 = vpop.permute.xlu0 %505
        %s508 = scalar_lea.vmem %s333, 24 [#allocation7]
        %509 = vst.msk [vmem:[%s508] sm:$0xff] %vm464, %v506
        %510 = vrot.lane.b32.xlu0 %v461, 72
        %v511 = vpop.permute.xlu0 %510
        %s513 = scalar_lea.vmem %s340, 24 [#allocation8]
        %514 = vst.msk [vmem:[%s513] sm:$0xff] %vm464, %v511
        %515 = vrot.lane.b32.xlu0 %v461, 40
        %v516 = vpop.permute.xlu0 %515
        %s518 = scalar_lea.vmem %s347, 24 [#allocation10]
        %519 = vst.msk [vmem:[%s518] sm:$0xff] %vm464, %v516
        %s520 = sand.u32 %s163, 1
        %s521 = scalar_lea.sflag [#allocation4], %s520
        %s522 = sand.u32 %s163, 1
        %s523 = smul.addr %s522, 32
        %s524 = scalar_lea.vmem [#allocation7], %s523
        %s525 = sand.u32 %s29, 1
        %s526 = scalar_lea.sflag [#allocation9], %s525
        %s527 = sand.u32 %s191, 1
        %s528 = smul.addr %s527, 32
        %s529 = scalar_lea.vmem [#allocation8], %s528
        %s530 = sand.u32 %s29, 1
        %s531 = scalar_lea.sflag [#allocation9], %s530
        %s532 = sand.u32 %s219, 1
        %s533 = smul.addr %s532, 32
        %s534 = scalar_lea.vmem [#allocation10], %s533
        // Predicated region
        $region49: #{tpu_custom_call.1} parent=39 // pred_check
          %p535 = pneg %p173
        $region50: #{tpu_custom_call.1} parent=39 // pred_check_branch
          %537 = sbr.rel (%p535) target = $region52
        $region51: #{tpu_custom_call.1} parent=39 // pred_region
          %s539 = ssub.s32 512, 512
          %540 = vsyncadd %s521, %s539
          %s541 = smul.addr %s33, 4
          %s542 = sadd.s32 %s34, %s541
          %s543 = smul.addr %s542, 128
          %s544 = scalar_lea.hbm %s5, %s543
          %s545 = sshll.u32 %s524, 4
          %s546 = int_to_ptr.vmem [resolvable:$true] %s545
          %551 = dma.vmem_to_hbm [thread:$0]  %s546, 512, %s544, %s521, 128, 128, 8
        $region52: #{tpu_custom_call.1} parent=39 // pred_fallthru
          _
        // Predicated region
        $region53: #{tpu_custom_call.1} parent=39 // pred_check
          %p552 = pneg %p201
        $region54: #{tpu_custom_call.1} parent=39 // pred_check_branch
          %554 = sbr.rel (%p552) target = $region56
        $region55: #{tpu_custom_call.1} parent=39 // pred_region
          %s556 = ssub.s32 512, 512
          %557 = vsyncadd %s526, %s556
          %s558 = smul.addr %s33, 4
          %s559 = sadd.s32 %s34, %s558
          %s560 = smul.addr %s559, 128
          %s561 = scalar_lea.hbm %s6, %s560
          %s562 = sshll.u32 %s529, 4
          %s563 = int_to_ptr.vmem [resolvable:$true] %s562
          %568 = dma.vmem_to_hbm [thread:$0]  %s563, 512, %s561, %s526, 128, 128, 8
        $region56: #{tpu_custom_call.1} parent=39 // pred_fallthru
          _
        // Predicated region
        $region57: #{tpu_custom_call.1} parent=39 // pred_check
          %p569 = pneg %p229
        $region58: #{tpu_custom_call.1} parent=39 // pred_check_branch
          %571 = sbr.rel (%p569) target = $region60
        $region59: #{tpu_custom_call.1} parent=39 // pred_region
          %s573 = ssub.s32 512, 512
          %574 = vsyncadd %s531, %s573
          %s575 = smul.addr %s33, 4
          %s576 = sadd.s32 %s34, %s575
          %s577 = smul.addr %s576, 128
          %s578 = scalar_lea.hbm %s7, %s577
          %s579 = sshll.u32 %s534, 4
          %s580 = int_to_ptr.vmem [resolvable:$true] %s579
          %585 = dma.vmem_to_hbm [thread:$0]  %s580, 512, %s578, %s531, 128, 128, 8
        $region60: #{tpu_custom_call.1} parent=39 // pred_fallthru
          _
      $region40: #{tpu_custom_call.1} parent=5 // pred_fallthru
        _
      %p586 = scmp.le.s32.totalorder 2, %s24
      // Predicated region
      $region61: #{tpu_custom_call.1} parent=5 // pred_check
        %p587 = pneg %p586
      $region62: #{tpu_custom_call.1} parent=5 // pred_check_branch
        %589 = sbr.rel (%p587) target = $region64
      $region63: #{tpu_custom_call.1} parent=5 // pred_region
        %s590 = ssub.s32 %s24, 2
        // Predicated region
        $region65: #{tpu_custom_call.1} parent=63 // pred_check
          %p591 = pneg %p179
        $region66: #{tpu_custom_call.1} parent=63 // pred_check_branch
          %593 = sbr.rel (%p591) target = $region68
        $region67: #{tpu_custom_call.1} parent=63 // pred_region
          %s594 = sand.u32 %s164, 1
          %s595 = scalar_lea.sflag [#allocation4], %s594
          %s596 = sand.u32 %s164, 1
          %s597 = smul.addr %s596, 32
          %s598 = scalar_lea.vmem [#allocation7], %s597
          %599 = dma.done %s595, 512
        $region68: #{tpu_custom_call.1} parent=63 // pred_fallthru
          _
        // Predicated region
        $region69: #{tpu_custom_call.1} parent=63 // pred_check
          %p600 = pneg %p207
        $region70: #{tpu_custom_call.1} parent=63 // pred_check_branch
          %602 = sbr.rel (%p600) target = $region72
        $region71: #{tpu_custom_call.1} parent=63 // pred_region
          %s603 = sand.u32 %s30, 1
          %s604 = scalar_lea.sflag [#allocation9], %s603
          %s605 = sand.u32 %s192, 1
          %s606 = smul.addr %s605, 32
          %s607 = scalar_lea.vmem [#allocation8], %s606
          %608 = dma.done %s604, 512
        $region72: #{tpu_custom_call.1} parent=63 // pred_fallthru
          _
        // Predicated region
        $region73: #{tpu_custom_call.1} parent=63 // pred_check
          %p609 = pneg %p235
        $region74: #{tpu_custom_call.1} parent=63 // pred_check_branch
          %611 = sbr.rel (%p609) target = $region76
        $region75: #{tpu_custom_call.1} parent=63 // pred_region
          %s612 = sand.u32 %s30, 1
          %s613 = scalar_lea.sflag [#allocation9], %s612
          %s614 = sand.u32 %s220, 1
          %s615 = smul.addr %s614, 32
          %s616 = scalar_lea.vmem [#allocation10], %s615
          %617 = dma.done %s613, 512
        $region76: #{tpu_custom_call.1} parent=63 // pred_fallthru
          _
      $region64: #{tpu_custom_call.1} parent=5 // pred_fallthru
        _
    $region6: #{tpu_custom_call.1} parent=1 // loop_footer
      %s28 = sadd.s32 1, %s24
    $region7: #{tpu_custom_call.1} parent=1 // loop_footer_branch
      %23 = sbr.rel target = $region3
    $region8: #{tpu_custom_call.1} parent=1 // loop_exit
      _
    %618 = vsyncpa [#allocation3], 1
    %s619 = scalar_lea.sflag [#allocation3], 1
    %620 = vsyncpa %s619, 1
    %621 = vsyncpa [#allocation6], 1
    %622 = vsyncpa [#allocation4], 1
    %s623 = scalar_lea.sflag [#allocation4], 1
    %624 = vsyncpa %s623, 1
    %625 = vsyncpa [#allocation9], 1
    %s626 = scalar_lea.sflag [#allocation9], 1
    %627 = vsyncpa %s626, 1

// kernel: tpu_custom_call.1
$region0: #{tpu_custom_call.1}
  #allocation0 [shape = 'u32[]', space=smem, size = 0x4, offset = 0x4, fixed_abs, tag = 'smem constant byte address 0x4 - core index']
  #allocation1 [shape = 'u32[144,128]{1,0:T(1,128)}', space=vmem, size = 0x12000, scoped, tag = 'internal scratch']
  %s0 = inlined_call_operand.hbm [shape: f32[2,8,32], index: 0, kind: input, shape index: {}]
  %s1 = inlined_call_operand.vmem [shape: f32[1,32], index: 1, kind: input, shape index: {}]
  %s2 = inlined_call_operand.vmem [shape: f32[1,32], index: 2, kind: input, shape index: {}]
  %s3 = inlined_call_operand.hbm [shape: f32[32,96], index: 3, kind: input, shape index: {}]
  %s4 = inlined_call_operand.vmem [shape: f32[1,96], index: 4, kind: input, shape index: {}]
  %s5 = inlined_call_operand.hbm [shape: f32[2,4,8,8], index: 5, kind: output, shape index: {0}]
  %s6 = inlined_call_operand.hbm [shape: f32[2,4,8,8], index: 6, kind: output, shape index: {1}]
  %s7 = inlined_call_operand.hbm [shape: f32[2,4,8,8], index: 7, kind: output, shape index: {2}]
  %8 = xla_tuple %s5, %s6, %s7
  %s9 = sld [smem:[#allocation0]]
  $region77: #{tpu_custom_call.1} parent=0
    _
  %s11 = ssub.s32 1, %s9
  %s12 = scalar_select 0, %s11, %s9
  $region1: #{tpu_custom_call.1} parent=0
    #allocation2 [shape = 'u8[8192]{0}', space=vmem, size = 0x2000, scoped, tag = 'input window, operand 0']
    #allocation3 [shape = 's32[2]{0}', space=sflag, size = 0x8, scoped, tag = 'scoped memory for tpu_custom_call.1']
    #allocation4 [shape = 's32[2]{0}', space=sflag, size = 0x8, scoped, tag = 'scoped memory for tpu_custom_call.1']
    #allocation5 [shape = 'u8[16384]{0}', space=vmem, size = 0x4000, scoped, tag = 'input window, operand 3, single buffered']
    #allocation6 [shape = 's32[1]{0}', space=sflag, size = 0x4, scoped, tag = 'scoped memory for tpu_custom_call.1']
    #allocation7 [shape = 'u8[32768]{0}', space=vmem, size = 0x8000, scoped, tag = 'output window, operand 0']
    #allocation8 [shape = 'u8[32768]{0}', space=vmem, size = 0x8000, scoped, tag = 'output window, operand 1']
    #allocation9 [shape = 's32[2]{0}', space=sflag, size = 0x8, scoped, tag = 'scoped memory for tpu_custom_call.1']
    #allocation10 [shape = 'u8[32768]{0}', space=vmem, size = 0x8000, scoped, tag = 'output window, operand 2']
    %13 = vsyncpa [#allocation3], 0
    %s14 = scalar_lea.sflag [#allocation3], 1
    %15 = vsyncpa %s14, 0
    %16 = vsyncpa [#allocation6], 0
    %17 = vsyncpa [#allocation4], 0
    %s18 = scalar_lea.sflag [#allocation4], 1
    %19 = vsyncpa %s18, 0
    %20 = vsyncpa [#allocation9], 0
    %s21 = scalar_lea.sflag [#allocation9], 1
    %22 = vsyncpa %s21, 0
    loop: start=0, step=1, limit=4
    $region2: #{tpu_custom_call.1} parent=1 // loop_pre_header
      _
    $region3: #{tpu_custom_call.1} parent=1 // loop_header
      %s24 = sphi 0, %s28
      %p25 = scmp.ge.s32.totalorder %s24, 4
      %s31 = sphi 0, %s43
      %s32 = sphi 0, %s39
      %s33 = sphi 0, %s31
      %s34 = sphi 0, %s32
      %s35 = sphi 0, %s33
      %s36 = sphi 0, %s34
      %s48 = sphi 0, %s50
      %s51 = sphi 0, %s48
      %s52 = sphi 0, %s51
      %s68 = sphi 0, %s52
      %s72 = sphi 0, %s72
      %s74 = sphi 0, %s72
      %s75 = sphi 0, %s74
      %s89 = sphi 0, %s75
      %s93 = sphi 0, %s93
      %s95 = sphi 0, %s93
      %s96 = sphi 0, %s95
      %s110 = sphi 0, %s96
      %s114 = sphi 0, %s114
      %s116 = sphi 0, %s114
      %s117 = sphi 0, %s116
      %s131 = sphi 0, %s117
      %s135 = sphi 0, %s135
      %s137 = sphi 0, %s135
      %s138 = sphi 0, %s137
      %s152 = sphi 0, %s138
      %s160 = sphi 0, %s162
      %s163 = sphi 0, %s160
      %s164 = sphi 0, %s163
      %s180 = sphi 0, %s164
      %s188 = sphi 0, %s190
      %s191 = sphi 0, %s188
      %s192 = sphi 0, %s191
      %s208 = sphi 0, %s192
      %s216 = sphi 0, %s218
      %s219 = sphi 0, %s216
      %s220 = sphi 0, %s219
      %s236 = sphi 0, %s220
    $region4: #{tpu_custom_call.1} parent=1 // loop_header_branch
      %27 = sbr.rel (%p25) target = $region8
    $region5: #{tpu_custom_call.1} parent=1 // loop_body
      %s29 = ssub.s32 %s24, 1
      %s30 = ssub.s32 %s24, 2
      %s37 = sadd.s32 1, %s32
      %p38 = scmp.ge.s32.totalorder %s37, 1
      %s39 = scalar_select %p38, 0, %s37
      %s40 = sadd.s32 1, %s31
      %s41 = scalar_select %p38, %s40, %s31
      %p42 = scmp.ge.s32.totalorder %s41, 2
      %s43 = scalar_select %p42, 0, %s41
      %s44 = ssub.s32 %s31, %s43
      %s45 = ssub.s32 %s32, %s39
      %s46 = sor.u32 %s44, %s45
      %p47 = scmp.eq.s32.totalorder %s46, 0
      %s49 = sadd.s32 %s48, 1
      %s50 = scalar_select %p47, %s48, %s49
      %p53 = pneg %p47
      %p54 = scmp.eq.s32.totalorder %s24, 1
      %p55 = por %p53, %p54
      %p56 = scmp.ne.s32.totalorder %s48, %s51
      %p57 = scmp.eq.s32.totalorder %s24, 0
      %p58 = por %p56, %p57
      %p59 = scmp.ne.s32.totalorder %s48, %s51
      %p60 = scmp.eq.s32.totalorder %s29, 1
      %p61 = por %p59, %p60
      %p62 = scmp.ne.s32.totalorder %s51, %s52
      %p63 = scmp.eq.s32.totalorder %s29, 0
      %p64 = por %p62, %p63
      %p65 = scmp.ne.s32.totalorder %s51, %s52
      %p66 = scmp.eq.s32.totalorder %s30, 1
      %p67 = por %p65, %p66
      %p69 = scmp.ne.s32.totalorder %s52, %s68
      %p70 = scmp.eq.s32.totalorder %s30, 0
      %p71 = por %p69, %p70
      %s73 = sadd.s32 %s72, 1
      %p76 = scmp.eq.s32.totalorder %s24, 1
      %p77 = scmp.ne.s32.totalorder %s72, %s74
      %p78 = scmp.eq.s32.totalorder %s24, 0
      %p79 = por %p77, %p78
      %p80 = scmp.ne.s32.totalorder %s72, %s74
      %p81 = scmp.eq.s32.totalorder %s29, 1
      %p82 = por %p80, %p81
      %p83 = scmp.ne.s32.totalorder %s74, %s75
      %p84 = scmp.eq.s32.totalorder %s29, 0
      %p85 = por %p83, %p84
      %p86 = scmp.ne.s32.totalorder %s74, %s75
      %p87 = scmp.eq.s32.totalorder %s30, 1
      %p88 = por %p86, %p87
      %p90 = scmp.ne.s32.totalorder %s75, %s89
      %p91 = scmp.eq.s32.totalorder %s30, 0
      %p92 = por %p90, %p91
      %s94 = sadd.s32 %s93, 1
      %p97 = scmp.eq.s32.totalorder %s24, 1
      %p98 = scmp.ne.s32.totalorder %s93, %s95
      %p99 = scmp.eq.s32.totalorder %s24, 0
      %p100 = por %p98, %p99
      %p101 = scmp.ne.s32.totalorder %s93, %s95
      %p102 = scmp.eq.s32.totalorder %s29, 1
      %p103 = por %p101, %p102
      %p104 = scmp.ne.s32.totalorder %s95, %s96
      %p105 = scmp.eq.s32.totalorder %s29, 0
      %p106 = por %p104, %p105
      %p107 = scmp.ne.s32.totalorder %s95, %s96
      %p108 = scmp.eq.s32.totalorder %s30, 1
      %p109 = por %p107, %p108
      %p111 = scmp.ne.s32.totalorder %s96, %s110
      %p112 = scmp.eq.s32.totalorder %s30, 0
      %p113 = por %p111, %p112
      %s115 = sadd.s32 %s114, 1
      %p118 = scmp.eq.s32.totalorder %s24, 1
      %p119 = scmp.ne.s32.totalorder %s114, %s116
      %p120 = scmp.eq.s32.totalorder %s24, 0
      %p121 = por %p119, %p120
      %p122 = scmp.ne.s32.totalorder %s114, %s116
      %p123 = scmp.eq.s32.totalorder %s29, 1
      %p124 = por %p122, %p123
      %p125 = scmp.ne.s32.totalorder %s116, %s117
      %p126 = scmp.eq.s32.totalorder %s29, 0
      %p127 = por %p125, %p126
      %p128 = scmp.ne.s32.totalorder %s116, %s117
      %p129 = scmp.eq.s32.totalorder %s30, 1
      %p130 = por %p128, %p129
      %p132 = scmp.ne.s32.totalorder %s117, %s131
      %p133 = scmp.eq.s32.totalorder %s30, 0
      %p134 = por %p132, %p133
      %s136 = sadd.s32 %s135, 1
      %p139 = scmp.eq.s32.totalorder %s24, 1
      %p140 = scmp.ne.s32.totalorder %s135, %s137
      %p141 = scmp.eq.s32.totalorder %s24, 0
      %p142 = por %p140, %p141
      %p143 = scmp.ne.s32.totalorder %s135, %s137
      %p144 = scmp.eq.s32.totalorder %s29, 1
      %p145 = por %p143, %p144
      %p146 = scmp.ne.s32.totalorder %s137, %s138
      %p147 = scmp.eq.s32.totalorder %s29, 0
      %p148 = por %p146, %p147
      %p149 = scmp.ne.s32.totalorder %s137, %s138
      %p150 = scmp.eq.s32.totalorder %s30, 1
      %p151 = por %p149, %p150
      %p153 = scmp.ne.s32.totalorder %s138, %s152
      %p154 = scmp.eq.s32.totalorder %s30, 0
      %p155 = por %p153, %p154
      %s156 = ssub.s32 %s31, %s43
      %s157 = ssub.s32 %s32, %s39
      %s158 = sor.u32 %s156, %s157
      %p159 = scmp.eq.s32.totalorder %s158, 0
      %s161 = sadd.s32 %s160, 1
      %s162 = scalar_select %p159, %s160, %s161
      %p165 = pneg %p159
      %p166 = scmp.eq.s32.totalorder %s24, 1
      %p167 = por %p165, %p166
      %p168 = scmp.ne.s32.totalorder %s160, %s163
      %p169 = scmp.eq.s32.totalorder %s24, 0
      %p170 = por %p168, %p169
      %p171 = scmp.ne.s32.totalorder %s160, %s163
      %p172 = scmp.eq.s32.totalorder %s29, 1
      %p173 = por %p171, %p172
      %p174 = scmp.ne.s32.totalorder %s163, %s164
      %p175 = scmp.eq.s32.totalorder %s29, 0
      %p176 = por %p174, %p175
      %p177 = scmp.ne.s32.totalorder %s163, %s164
      %p178 = scmp.eq.s32.totalorder %s30, 1
      %p179 = por %p177, %p178
      %p181 = scmp.ne.s32.totalorder %s164, %s180
      %p182 = scmp.eq.s32.totalorder %s30, 0
      %p183 = por %p181, %p182
      %s184 = ssub.s32 %s31, %s43
      %s185 = ssub.s32 %s32, %s39
      %s186 = sor.u32 %s184, %s185
      %p187 = scmp.eq.s32.totalorder %s186, 0
      %s189 = sadd.s32 %s188, 1
      %s190 = scalar_select %p187, %s188, %s189
      %p193 = pneg %p187
      %p194 = scmp.eq.s32.totalorder %s24, 1
      %p195 = por %p193, %p194
      %p196 = scmp.ne.s32.totalorder %s188, %s191
      %p197 = scmp.eq.s32.totalorder %s24, 0
      %p198 = por %p196, %p197
      %p199 = scmp.ne.s32.totalorder %s188, %s191
      %p200 = scmp.eq.s32.totalorder %s29, 1
      %p201 = por %p199, %p200
      %p202 = scmp.ne.s32.totalorder %s191, %s192
      %p203 = scmp.eq.s32.totalorder %s29, 0
      %p204 = por %p202, %p203
      %p205 = scmp.ne.s32.totalorder %s191, %s192
      %p206 = scmp.eq.s32.totalorder %s30, 1
      %p207 = por %p205, %p206
      %p209 = scmp.ne.s32.totalorder %s192, %s208
      %p210 = scmp.eq.s32.totalorder %s30, 0
      %p211 = por %p209, %p210
      %s212 = ssub.s32 %s31, %s43
      %s213 = ssub.s32 %s32, %s39
      %s214 = sor.u32 %s212, %s213
      %p215 = scmp.eq.s32.totalorder %s214, 0
      %s217 = sadd.s32 %s216, 1
      %s218 = scalar_select %p215, %s216, %s217
      %p221 = pneg %p215
      %p222 = scmp.eq.s32.totalorder %s24, 1
      %p223 = por %p221, %p222
      %p224 = scmp.ne.s32.totalorder %s216, %s219
      %p225 = scmp.eq.s32.totalorder %s24, 0
      %p226 = por %p224, %p225
      %p227 = scmp.ne.s32.totalorder %s216, %s219
      %p228 = scmp.eq.s32.totalorder %s29, 1
      %p229 = por %p227, %p228
      %p230 = scmp.ne.s32.totalorder %s219, %s220
      %p231 = scmp.eq.s32.totalorder %s29, 0
      %p232 = por %p230, %p231
      %p233 = scmp.ne.s32.totalorder %s219, %s220
      %p234 = scmp.eq.s32.totalorder %s30, 1
      %p235 = por %p233, %p234
      %p237 = scmp.ne.s32.totalorder %s220, %s236
      %p238 = scmp.eq.s32.totalorder %s30, 0
      %p239 = por %p237, %p238
      %p240 = scmp.le.s32.totalorder 1, %s24
      %p241 = scmp.lt.s32.totalorder %s24, 3
      %p242 = pnand %p240, %p241
      %p243 = pneg %p242
      // Predicated region
      $region9: #{tpu_custom_call.1} parent=5 // pred_check
        _
      $region10: #{tpu_custom_call.1} parent=5 // pred_check_branch
        %245 = sbr.rel (%p242) target = $region12
      $region11: #{tpu_custom_call.1} parent=5 // pred_region
        %s246 = ssub.s32 %s24, 1
        // Predicated region
        $region13: #{tpu_custom_call.1} parent=11 // pred_check
          %p247 = pneg %p85
        $region14: #{tpu_custom_call.1} parent=11 // pred_check_branch
          %249 = sbr.rel (%p247) target = $region16
        $region15: #{tpu_custom_call.1} parent=11 // pred_region
          _
        $region16: #{tpu_custom_call.1} parent=11 // pred_fallthru
          _
        // Predicated region
        $region17: #{tpu_custom_call.1} parent=11 // pred_check
          %p250 = pneg %p106
        $region18: #{tpu_custom_call.1} parent=11 // pred_check_branch
          %252 = sbr.rel (%p250) target = $region20
        $region19: #{tpu_custom_call.1} parent=11 // pred_region
          _
        $region20: #{tpu_custom_call.1} parent=11 // pred_fallthru
          _
        // Predicated region
        $region21: #{tpu_custom_call.1} parent=11 // pred_check
          %p253 = pneg %p127
        $region22: #{tpu_custom_call.1} parent=11 // pred_check_branch
          %255 = sbr.rel (%p253) target = $region24
        $region23: #{tpu_custom_call.1} parent=11 // pred_region
          %s257 = ssub.s32 512, 512
          %258 = vsyncadd [#allocation6], %s257
          %s259 = sshll.u32 [#allocation5], 4
          %s260 = int_to_ptr.vmem [resolvable:$true] %s259
          %265 = dma.hbm_to_vmem [thread:$0]  %s3, 512, %s260, [#allocation6], 128, 128, 8
        $region24: #{tpu_custom_call.1} parent=11 // pred_fallthru
          _
        // Predicated region
        $region25: #{tpu_custom_call.1} parent=11 // pred_check
          %p266 = pneg %p148
        $region26: #{tpu_custom_call.1} parent=11 // pred_check_branch
          %268 = sbr.rel (%p266) target = $region28
        $region27: #{tpu_custom_call.1} parent=11 // pred_region
          _
        $region28: #{tpu_custom_call.1} parent=11 // pred_fallthru
          _
      $region12: #{tpu_custom_call.1} parent=5 // pred_fallthru
        _
      %p269 = scmp.lt.s32.totalorder %s24, 2
      // Predicated region
      $region29: #{tpu_custom_call.1} parent=5 // pred_check
        %p270 = pneg %p269
      $region30: #{tpu_custom_call.1} parent=5 // pred_check_branch
        %272 = sbr.rel (%p270) target = $region32
      $region31: #{tpu_custom_call.1} parent=5 // pred_region
        // Predicated region
        $region33: #{tpu_custom_call.1} parent=31 // pred_check
          %p273 = pneg %p58
        $region34: #{tpu_custom_call.1} parent=31 // pred_check_branch
          %275 = sbr.rel (%p273) target = $region36
        $region35: #{tpu_custom_call.1} parent=31 // pred_region
          %s276 = sand.u32 %s48, 1
          %s277 = scalar_lea.sflag [#allocation3], %s276
          %s278 = sand.u32 %s48, 1
          %s279 = smul.addr %s278, 8
          %s280 = scalar_lea.vmem [#allocation2], %s279
          %s282 = ssub.s32 128, 128
          %283 = vsyncadd %s277, %s282
          %s284 = sadd.s32 %s32, %s31
          %s285 = smul.addr %s284, 128
          %s286 = scalar_lea.hbm %s0, %s285
          %s288 = sshll.u32 %s280, 4
          %s289 = int_to_ptr.vmem [resolvable:$true] %s288
          %291 = dma.hbm_to_vmem [thread:$0]  %s286, 128, %s289, %s277
        $region36: #{tpu_custom_call.1} parent=31 // pred_fallthru
          _
      $region32: #{tpu_custom_call.1} parent=5 // pred_fallthru
        _
      %p292 = scmp.le.s32.totalorder 1, %s24
      %p293 = scmp.lt.s32.totalorder %s24, 3
      %p294 = pnand %p292, %p293
      %p295 = pneg %p294
      // Predicated region
      $region37: #{tpu_custom_call.1} parent=5 // pred_check
        _
      $region38: #{tpu_custom_call.1} parent=5 // pred_check_branch
        %297 = sbr.rel (%p294) target = $region40
      $region39: #{tpu_custom_call.1} parent=5 // pred_region
        %s298 = ssub.s32 %s24, 1
        %s299 = sand.u32 %s51, 1
        %s300 = scalar_lea.sflag [#allocation3], %s299
        %s301 = sand.u32 %s51, 1
        %s302 = smul.addr %s301, 8
        %s303 = scalar_lea.vmem [#allocation2], %s302
        // Predicated region
        $region41: #{tpu_custom_call.1} parent=39 // pred_check
          %p304 = pneg %p64
        $region42: #{tpu_custom_call.1} parent=39 // pred_check_branch
          %306 = sbr.rel (%p304) target = $region44
        $region43: #{tpu_custom_call.1} parent=39 // pred_region
          %307 = dma.done %s300, 128
        $region44: #{tpu_custom_call.1} parent=39 // pred_fallthru
          _
        // Predicated region
        $region45: #{tpu_custom_call.1} parent=39 // pred_check
          %p308 = pneg %p127
        $region46: #{tpu_custom_call.1} parent=39 // pred_check_branch
          %310 = sbr.rel (%p308) target = $region48
        $region47: #{tpu_custom_call.1} parent=39 // pred_region
          %311 = dma.done [#allocation6], 512
        $region48: #{tpu_custom_call.1} parent=39 // pred_fallthru
          _
        %s312 = sand.u32 %s51, 1
        %s313 = scalar_lea.sflag [#allocation3], %s312
        %s314 = sand.u32 %s51, 1
        %s315 = smul.addr %s314, 8
        %s316 = scalar_lea.vmem [#allocation2], %s315
        %p317 = pneg %p64
        %p318 = pneg %p61
        %p319 = pneg %p85
        %p320 = pneg %p82
        %p321 = pneg %p106
        %p322 = pneg %p103
        %p323 = pneg %p127
        %p324 = pneg %p124
        %p325 = pneg %p148
        %p326 = pneg %p145
        %p327 = pneg %p176
        %p328 = pneg %p173
        %s329 = sand.u32 %s163, 1
        %s330 = scalar_lea.sflag [#allocation4], %s329
        %s331 = sand.u32 %s163, 1
        %s332 = smul.addr %s331, 32
        %s333 = scalar_lea.vmem [#allocation7], %s332
        %p334 = pneg %p204
        %p335 = pneg %p201
        %s336 = sand.u32 %s29, 1
        %s337 = scalar_lea.sflag [#allocation9], %s336
        %s338 = sand.u32 %s191, 1
        %s339 = smul.addr %s338, 32
        %s340 = scalar_lea.vmem [#allocation8], %s339
        %p341 = pneg %p232
        %p342 = pneg %p229
        %s343 = sand.u32 %s29, 1
        %s344 = scalar_lea.sflag [#allocation9], %s343
        %s345 = sand.u32 %s219, 1
        %s346 = smul.addr %s345, 32
        %s347 = scalar_lea.vmem [#allocation10], %s346
        %v348 = vld [vmem:[%s303] sm:$0xff]
        %v349 = vld [vmem:[%s1] sm:$0x1]
        %v350 = vld [vmem:[%s2] sm:$0x1]
        %vm351 = vcmask 261120
        %v352 = vsel %vm351, %v348, 0.0
        %353 = vadd.xlane.f32.xlu0 %v352
        %v354 = vpop.xlane.xlu0 %353
        %v355 = vrcp.pop 32.0
        %v356 = vmul.f32 %v354, %v355
        %v357 = vsub.f32 %v348, %v356
        %v358 = vmul.f32 %v357, %v357
        %v359 = vsel %vm351, %v358, 0.0
        %360 = vadd.xlane.f32.xlu0 %v359
        %v361 = vpop.xlane.xlu0 %360
        %v362 = vmul.f32 %v361, %v355
        %v363 = vadd.f32 %v362, 1e-05
        %v364 = vrsqrt.pop %v363
        %v365 = vmul.f32 %v357, %v364
        %v367 = vlaneseq
        %v368 = vshrl.u32 %v367, 7
        %v369 = vsub.s32 0, %v368
        %v370 = vrot.slane %v349, %v369
        %v372 = vmul.f32 %v365, %v370
        %v374 = vlaneseq
        %v375 = vshrl.u32 %v374, 7
        %v376 = vsub.s32 0, %v375
        %v377 = vrot.slane %v350, %v376
        %v379 = vadd.f32 %v372, %v377
        %v380 = vld [vmem:[#allocation5] sm:$0xff]
        %v381 = vld [vmem:[#allocation5 + $0x8] sm:$0xff]
        %v382 = vld [vmem:[#allocation5 + $0x10] sm:$0xff]
        %v383 = vld [vmem:[#allocation5 + $0x18] sm:$0xff]
        %v384 = vld [vmem:[%s4] sm:$0x1]
        %v386 = vlaneseq
        %v387 = vshrl.u32 %v386, 7
        %v388 = vsub.s32 0, %v387
        %v389 = vrot.slane %v384, %v388
        %v392 = vsel %vm351, %v379, 0
        %394 = vmatprep.subr.mxu0 0.0
        %395 = vmatpush1.msra.mxu0 %v380
        %396 = vmatprep.subr.mxu0 0.0
        %397 = vmatpush1.msra.mxu0 %v381
        %398 = vmatprep.subr.mxu0 0.0
        %399 = vmatpush1.msra.mxu0 %v382
        %400 = vmatprep.subr.mxu0 0.0
        %401 = vmatpush1.msra.mxu0 %v383
        %402 = vmatprep.subr.mxu0 0.0
        %403 = vmatpush1.msra.mxu0 0.0
        %404 = vmatprep.subr.mxu0 0.0
        %405 = vmatpush1.msra.mxu0 0.0
        %406 = vmatprep.subr.mxu0 0.0
        %407 = vmatpush1.msra.mxu0 0.0
        %408 = vmatprep.subr.mxu0 0.0
        %409 = vmatpush1.msra.mxu0 0.0
        %410 = vmatprep.subr.mxu0 0.0
        %411 = vmatpush1.msra.mxu0 0.0
        %412 = vmatprep.subr.mxu0 0.0
        %413 = vmatpush1.msra.mxu0 0.0
        %414 = vmatprep.subr.mxu0 0.0
        %415 = vmatpush1.msra.mxu0 0.0
        %416 = vmatprep.subr.mxu0 0.0
        %417 = vmatpush1.msra.mxu0 0.0
        %418 = vmatprep.subr.mxu0 0.0
        %419 = vmatpush1.msra.mxu0 0.0
        %420 = vmatprep.subr.mxu0 0.0
        %421 = vmatpush1.msra.mxu0 0.0
        %422 = vmatprep.subr.mxu0 0.0
        %423 = vmatpush1.msra.mxu0 0.0
        %424 = vmatprep.subr.mxu0 0.0
        %425 = vmatpush1.msra.mxu0 0.0
        %426 = vmatprep.subr.mxu0 0.0
        %427 = vmatpush1.msra.mxu0 0.0
        %428 = vmatprep.subr.mxu0 0.0
        %429 = vmatpush1.msra.mxu0 0.0
        %430 = vmatprep.subr.mxu0 0.0
        %431 = vmatpush1.msra.mxu0 0.0
        %432 = vmatprep.subr.mxu0 0.0
        %433 = vmatpush1.msra.mxu0 0.0
        %434 = vmatprep.subr.mxu0 0.0
        %435 = vmatpush1.msra.mxu0 0.0
        %436 = vmatprep.subr.mxu0 0.0
        %437 = vmatpush1.msra.mxu0 0.0
        %438 = vmatprep.subr.mxu0 0.0
        %439 = vmatpush1.msra.mxu0 0.0
        %440 = vmatprep.subr.mxu0 0.0
        %441 = vmatpush1.msra.mxu0 0.0
        %442 = vmatprep.subr.mxu0 0.0
        %443 = vmatpush1.msra.mxu0 0.0
        %444 = vmatprep.subr.mxu0 0.0
        %445 = vmatpush1.msra.mxu0 0.0
        %446 = vmatprep.subr.mxu0 0.0
        %447 = vmatpush1.msra.mxu0 0.0
        %448 = vmatprep.subr.mxu0 0.0
        %449 = vmatpush1.msra.mxu0 0.0
        %450 = vmatprep.subr.mxu0 0.0
        %451 = vmatpush1.msra.mxu0 0.0
        %452 = vmatprep.subr.mxu0 0.0
        %453 = vmatpush1.msra.mxu0 0.0
        %454 = vmatprep.subr.mxu0 0.0
        %455 = vmatpush1.msra.mxu0 0.0
        %456 = vmatprep.subr.mxu0 0.0
        %457 = vmatpush1.msra.mxu0 0.0
        %458 = vmatprep.mubr.f32.mxu0 0.0
        %459 = vmatmul.mubr.f32.gmra.mrb[0].mxu0 %v392
        %v460 = vpop.f32.mrb[0].mxu0
        %v461 = vadd.f32 %v389, %v460
        %v462 = vpop.f32.mrb[0].mxu0
        %463 = vdwg.mxu0
        %vm464 = vcmask 64512
        %465 = vst.msk [vmem:[%s333] sm:$0xff] %vm464, %v461
        %467 = vrot.lane.b32.xlu0 %v461, 96
        %v468 = vpop.permute.xlu0 %467
        %470 = vst.msk [vmem:[%s340] sm:$0xff] %vm464, %v468
        %471 = vrot.lane.b32.xlu0 %v461, 64
        %v472 = vpop.permute.xlu0 %471
        %474 = vst.msk [vmem:[%s347] sm:$0xff] %vm464, %v472
        %475 = vrot.lane.b32.xlu0 %v461, 120
        %v476 = vpop.permute.xlu0 %475
        %s478 = scalar_lea.vmem %s333, 8 [#allocation7]
        %479 = vst.msk [vmem:[%s478] sm:$0xff] %vm464, %v476
        %480 = vrot.lane.b32.xlu0 %v461, 88
        %v481 = vpop.permute.xlu0 %480
        %s483 = scalar_lea.vmem %s340, 8 [#allocation8]
        %484 = vst.msk [vmem:[%s483] sm:$0xff] %vm464, %v481
        %485 = vrot.lane.b32.xlu0 %v461, 56
        %v486 = vpop.permute.xlu0 %485
        %s488 = scalar_lea.vmem %s347, 8 [#allocation10]
        %489 = vst.msk [vmem:[%s488] sm:$0xff] %vm464, %v486
        %490 = vrot.lane.b32.xlu0 %v461, 112
        %v491 = vpop.permute.xlu0 %490
        %s493 = scalar_lea.vmem %s333, 16 [#allocation7]
        %494 = vst.msk [vmem:[%s493] sm:$0xff] %vm464, %v491
        %495 = vrot.lane.b32.xlu0 %v461, 80
        %v496 = vpop.permute.xlu0 %495
        %s498 = scalar_lea.vmem %s340, 16 [#allocation8]
        %499 = vst.msk [vmem:[%s498] sm:$0xff] %vm464, %v496
        %500 = vrot.lane.b32.xlu0 %v461, 48
        %v501 = vpop.permute.xlu0 %500
        %s503 = scalar_lea.vmem %s347, 16 [#allocation10]
        %504 = vst.msk [vmem:[%s503] sm:$0xff] %vm464, %v501
        %505 = vrot.lane.b32.xlu0 %v461, 104
        %v506 = vpop.permute.xlu0 %505
        %s508 = scalar_lea.vmem %s333, 24 [#allocation7]
        %509 = vst.msk [vmem:[%s508] sm:$0xff] %vm464, %v506
        %510 = vrot.lane.b32.xlu0 %v461, 72
        %v511 = vpop.permute.xlu0 %510
        %s513 = scalar_lea.vmem %s340, 24 [#allocation8]
        %514 = vst.msk [vmem:[%s513] sm:$0xff] %vm464, %v511
        %515 = vrot.lane.b32.xlu0 %v461, 40
        %v516 = vpop.permute.xlu0 %515
        %s518 = scalar_lea.vmem %s347, 24 [#allocation10]
        %519 = vst.msk [vmem:[%s518] sm:$0xff] %vm464, %v516
        %s520 = sand.u32 %s163, 1
        %s521 = scalar_lea.sflag [#allocation4], %s520
        %s522 = sand.u32 %s163, 1
        %s523 = smul.addr %s522, 32
        %s524 = scalar_lea.vmem [#allocation7], %s523
        %s525 = sand.u32 %s29, 1
        %s526 = scalar_lea.sflag [#allocation9], %s525
        %s527 = sand.u32 %s191, 1
        %s528 = smul.addr %s527, 32
        %s529 = scalar_lea.vmem [#allocation8], %s528
        %s530 = sand.u32 %s29, 1
        %s531 = scalar_lea.sflag [#allocation9], %s530
        %s532 = sand.u32 %s219, 1
        %s533 = smul.addr %s532, 32
        %s534 = scalar_lea.vmem [#allocation10], %s533
        // Predicated region
        $region49: #{tpu_custom_call.1} parent=39 // pred_check
          %p535 = pneg %p173
        $region50: #{tpu_custom_call.1} parent=39 // pred_check_branch
          %537 = sbr.rel (%p535) target = $region52
        $region51: #{tpu_custom_call.1} parent=39 // pred_region
          %s539 = ssub.s32 512, 512
          %540 = vsyncadd %s521, %s539
          %s541 = smul.addr %s33, 4
          %s542 = sadd.s32 %s34, %s541
          %s543 = smul.addr %s542, 128
          %s544 = scalar_lea.hbm %s5, %s543
          %s545 = sshll.u32 %s524, 4
          %s546 = int_to_ptr.vmem [resolvable:$true] %s545
          %551 = dma.vmem_to_hbm [thread:$0]  %s546, 512, %s544, %s521, 128, 128, 8
        $region52: #{tpu_custom_call.1} parent=39 // pred_fallthru
          _
        // Predicated region
        $region53: #{tpu_custom_call.1} parent=39 // pred_check
          %p552 = pneg %p201
        $region54: #{tpu_custom_call.1} parent=39 // pred_check_branch
          %554 = sbr.rel (%p552) target = $region56
        $region55: #{tpu_custom_call.1} parent=39 // pred_region
          %s556 = ssub.s32 512, 512
          %557 = vsyncadd %s526, %s556
          %s558 = smul.addr %s33, 4
          %s559 = sadd.s32 %s34, %s558
          %s560 = smul.addr %s559, 128
          %s561 = scalar_lea.hbm %s6, %s560
          %s562 = sshll.u32 %s529, 4
          %s563 = int_to_ptr.vmem [resolvable:$true] %s562
          %568 = dma.vmem_to_hbm [thread:$0]  %s563, 512, %s561, %s526, 128, 128, 8
        $region56: #{tpu_custom_call.1} parent=39 // pred_fallthru
          _
        // Predicated region
        $region57: #{tpu_custom_call.1} parent=39 // pred_check
          %p569 = pneg %p229
        $region58: #{tpu_custom_call.1} parent=39 // pred_check_branch
          %571 = sbr.rel (%p569) target = $region60
        $region59: #{tpu_custom_call.1} parent=39 // pred_region
          %s573 = ssub.s32 512, 512
          %574 = vsyncadd %s531, %s573
          %s575 = smul.addr %s33, 4
          %s576 = sadd.s32 %s34, %s575
          %s577 = smul.addr %s576, 128
          %s578 = scalar_lea.hbm %s7, %s577
          %s579 = sshll.u32 %s534, 4
          %s580 = int_to_ptr.vmem [resolvable:$true] %s579
          %585 = dma.vmem_to_hbm [thread:$0]  %s580, 512, %s578, %s531, 128, 128, 8
        $region60: #{tpu_custom_call.1} parent=39 // pred_fallthru
          _
      $region40: #{tpu_custom_call.1} parent=5 // pred_fallthru
        _
      %p586 = scmp.le.s32.totalorder 2, %s24
      // Predicated region
      $region61: #{tpu_custom_call.1} parent=5 // pred_check
        %p587 = pneg %p586
      $region62: #{tpu_custom_call.1} parent=5 // pred_check_branch
        %589 = sbr.rel (%p587) target = $region64
      $region63: #{tpu_custom_call.1} parent=5 // pred_region
        %s590 = ssub.s32 %s24, 2
        // Predicated region
        $region65: #{tpu_custom_call.1} parent=63 // pred_check
          %p591 = pneg %p179
        $region66: #{tpu_custom_call.1} parent=63 // pred_check_branch
          %593 = sbr.rel (%p591) target = $region68
        $region67: #{tpu_custom_call.1} parent=63 // pred_region
          %s594 = sand.u32 %s164, 1
          %s595 = scalar_lea.sflag [#allocation4], %s594
          %s596 = sand.u32 %s164, 1
          %s597 = smul.addr %s596, 32
          %s598 = scalar_lea.vmem [#allocation7], %s597
          %599 = dma.done %s595, 512
        $region68: #{tpu_custom_call.1} parent=63 // pred_fallthru
          _
        // Predicated region
        $region69: #{tpu_custom_call.1} parent=63 // pred_check
          %p600 = pneg %p207
        $region70: #{tpu_custom_call.1} parent=63 // pred_check_branch
          %602 = sbr.rel (%p600) target = $region72
        $region71: #{tpu_custom_call.1} parent=63 // pred_region
          %s603 = sand.u32 %s30, 1
          %s604 = scalar_lea.sflag [#allocation9], %s603
          %s605 = sand.u32 %s192, 1
          %s606 = smul.addr %s605, 32
          %s607 = scalar_lea.vmem [#allocation8], %s606
          %608 = dma.done %s604, 512
        $region72: #{tpu_custom_call.1} parent=63 // pred_fallthru
          _
        // Predicated region
        $region73: #{tpu_custom_call.1} parent=63 // pred_check
          %p609 = pneg %p235
        $region74: #{tpu_custom_call.1} parent=63 // pred_check_branch
          %611 = sbr.rel (%p609) target = $region76
        $region75: #{tpu_custom_call.1} parent=63 // pred_region
          %s612 = sand.u32 %s30, 1
          %s613 = scalar_lea.sflag [#allocation9], %s612
          %s614 = sand.u32 %s220, 1
          %s615 = smul.addr %s614, 32
          %s616 = scalar_lea.vmem [#allocation10], %s615
          %617 = dma.done %s613, 512
        $region76: #{tpu_custom_call.1} parent=63 // pred_fallthru
          _
      $region64: #{tpu_custom_call.1} parent=5 // pred_fallthru
        _
    $region6: #{tpu_custom_call.1} parent=1 // loop_footer
      %s28 = sadd.s32 1, %s24
    $region7: #{tpu_custom_call.1} parent=1 // loop_footer_branch
      %23 = sbr.rel target = $region3
    $region8: #{tpu_custom_call.1} parent=1 // loop_exit
      _
    %618 = vsyncpa [#allocation3], 1
    %s619 = scalar_lea.sflag [#allocation3], 1
    %620 = vsyncpa %s619, 1
    %621 = vsyncpa [#allocation6], 1
    %622 = vsyncpa [#allocation4], 1
    %s623 = scalar_lea.sflag [#allocation4], 1
    %624 = vsyncpa %s623, 1
    %625 = vsyncpa [#allocation9], 1
    %s626 = scalar_lea.sflag [#allocation9], 1
    %627 = vsyncpa %s626, 1

</llo_original>
